<compile_context>
chip_gen: v7x
topology: tpu7x:2x2x1
jax: 0.10.0
libtpu: 0.0.40
codegen_flags: <defaults>
</compile_context>

<pallas_src>
import math

import numpy as np
import jax
import jax.numpy as jnp
from jax.experimental import pallas as pl
from jax.experimental.pallas import tpu as pltpu

_MIB = 1024 * 1024


def _bilinear_interp_matrix(in_size, out_size, scale_factor):
    """Dense (out_size, in_size) 1-D bilinear interpolation matrix (float64 numpy).

    Matches torch F.interpolate(mode='bilinear', align_corners=False) with an explicit
    scale_factor (src = (dst + 0.5) / scale_factor - 0.5, clamped at 0).
    """
    inv_scale = 1.0 / float(scale_factor)
    j = np.arange(out_size, dtype=np.float64)
    src = np.maximum((j + 0.5) * inv_scale - 0.5, 0.0)
    lo = np.minimum(np.floor(src), in_size - 1).astype(np.int64)
    hi = np.minimum(lo + 1, in_size - 1)
    lam = np.clip(src - lo, 0.0, 1.0)
    m = np.zeros((out_size, in_size), dtype=np.float64)
    rows = np.arange(out_size, dtype=np.int64)
    m[rows, lo] += 1.0 - lam
    m[rows, hi] += lam
    return m


def _vmem_tile_bytes(rows, cols):
    """f32 VMEM bytes of an (rows, cols) slab after (8,128) lane/sublane padding."""
    rp = -(-rows // 8) * 8
    cp = -(-cols // 128) * 128
    return 4 * rp * cp


def _make_kernel(tile_m, H, W, scale_dims):
    n_scales = len(scale_dims)

    def kernel(x_ref, t_ref, *rest):
        o_ref = rest[-1]
        mat_refs = rest[:-1]

        # Zero the per-core VMEM-resident accumulator at the first step of the
        # reduction ("arbitrary") axis.
        @pl.when(pl.program_id(1) == 0)
        def _init():
            o_ref[...] = jnp.zeros_like(o_ref)

        # Difference computed ONCE for all scales (bilinear interp is linear).
        dm = x_ref[...].astype(jnp.float32) - t_ref[...].astype(jnp.float32)
        dm2 = dm.reshape(tile_m * H, W)                    # merge batch into sublanes

        part = jnp.zeros((1, 1), jnp.float32)
        for si in range(n_scales):
            _, w_out = scale_dims[si]
            awt = mat_refs[2 * si][...]                    # (W, Wo), 1/count folded in
            aht = mat_refs[2 * si + 1][...]                # (H, Ho)

            # W-interp: ONE big MXU matmul for the whole tile.
            y1 = jnp.dot(dm2, awt, preferred_element_type=jnp.float32)  # (tile_m*H, Wo)

            # H-interp: batched minor (last-two-dims) transpose + ONE big MXU matmul.
            y1 = y1.reshape(tile_m, H, w_out)
            y1t = jnp.transpose(y1, (0, 2, 1)).reshape(tile_m * w_out, H)
            y2 = jnp.dot(y1t, aht, preferred_element_type=jnp.float32)  # (tile_m*Wo, Ho)

            # One reduction per scale per tile (was: per image per scale).
            r = jnp.sum(jnp.abs(y2), axis=1, keepdims=True)
            part = part + jnp.sum(r, axis=0, keepdims=True)             # (1, 1)

        o_ref[...] += part

    return kernel


def multiscale_spectrogram_loss(x, target, scales, *, tile_m=None):
    """Forward pass of MultiScaleSpectrogramLoss. x, target: (N, C, H, W) -> scalar."""
    assert x.shape == target.shape and x.ndim == 4
    N, C, H, W = x.shape
    M = N * C

    xm = x.reshape(M, H, W)
    tm = target.reshape(M, H, W)

    # ---- host-built separable interpolation matrices (exact PyTorch convention);
    #      the L1-mean normalisation is folded into A_w^T (positive => commutes with |.|).
    mats = []
    scale_dims = []
    mat_vmem = 0
    mat_raw_bytes = 0
    for s in scales:
        h_out = int(math.floor(H * s))
        w_out = int(math.floor(W * s))
        inv_count = 1.0 / float(M * h_out * w_out)
        awt = _bilinear_interp_matrix(W, w_out, s).T * inv_count        # (W, Wo)
        aht = _bilinear_interp_matrix(H, h_out, s).T                    # (H, Ho)
        mats += [jnp.asarray(awt, jnp.float32), jnp.asarray(aht, jnp.float32)]
        scale_dims.append((h_out, w_out))
        mat_vmem += _vmem_tile_bytes(W, w_out) + _vmem_tile_bytes(H, h_out)
        mat_raw_bytes += 4 * (W * w_out + H * h_out)

    # ---- VMEM budget / tile size -------------------------------------------------
    try:
        vmem_physical = int(pltpu.get_tpu_info().vmem_capacity_bytes)
    except Exception:
        vmem_physical = 64 * _MIB                       # conservative (v7x per-core)
    vmem_limit = int(min(96 * _MIB, max(32 * _MIB, vmem_physical - 16 * _MIB)))

    # Per-image VMEM footprint (lane/sublane padded): double-buffered x,t blocks,
    # the diff, plus the worst scale's intermediates (y1, transposed y1, y2).
    img_in = _vmem_tile_bytes(H, W)
    worst_scale = max(_vmem_tile_bytes(H, wo) + _vmem_tile_bytes(wo, H)
                      + _vmem_tile_bytes(wo, ho) for (ho, wo) in scale_dims)
    per_img_vmem = 2 * 2 * img_in + img_in + worst_scale
    budget = 0.6 * vmem_limit - 2 * mat_vmem            # matrices are double-buffered
    max_tile_by_vmem = max(1, int(budget // max(per_img_vmem, 1)))

    bytes_per_img = H * W * 4
    if tile_m is None:
        # ~2 MiB of real input per grid step (>=85% of HBM roofline per measurements),
        # and at least 8 images so the merged matmul M-dim is MXU friendly.
        tile_m = max(8, -(-2 * _MIB // bytes_per_img))
    tile_m = int(max(1, min(int(tile_m), max_tile_by_vmem, M)))

    # ---- grid: (parallel across TensorCores) x (arbitrary reduction over tiles) ---
    n_tiles = -(-M // tile_m)
    n_par = 2 if n_tiles >= 2 else 1                    # 2 TCs on v7x; harmless elsewhere
    steps = -(-n_tiles // n_par)
    m_pad = n_par * steps * tile_m
    if m_pad != M:
        # Zero padding is exact: padded images give diff == 0 and contribute nothing;
        # normalisation uses the true element counts folded into the matrices above.
        xm = jnp.pad(xm, ((0, m_pad - M), (0, 0), (0, 0)))
        tm = jnp.pad(tm, ((0, m_pad - M), (0, 0), (0, 0)))

    in_specs = [
        pl.BlockSpec((tile_m, H, W), lambda p, g: (p * steps + g, 0, 0)),
        pl.BlockSpec((tile_m, H, W), lambda p, g: (p * steps + g, 0, 0)),
    ]
    for (h_out, w_out) in scale_dims:
        # Constant-index blocks: DMA'd once, re-used across the whole grid.
        in_specs += [
            pl.BlockSpec((W, w_out), lambda p, g: (0, 0)),
            pl.BlockSpec((H, h_out), lambda p, g: (0, 0)),
        ]

    flops = 2 * m_pad * sum(H * W * wo + wo * H * ho for (ho, wo) in scale_dims)
    bytes_accessed = 2 * m_pad * bytes_per_img + mat_raw_bytes + 4 * n_par

    kernel = _make_kernel(tile_m, H, W, tuple(scale_dims))

    out = pl.pallas_call(
        kernel,
        grid=(n_par, steps),
        out_shape=jax.ShapeDtypeStruct((n_par, 1, 1), jnp.float32),
        in_specs=in_specs,
        # Per-core partial sum: the block is revisited along the "arbitrary" axis only.
        out_specs=pl.BlockSpec((None, 1, 1), lambda p, g: (p, 0, 0)),
        compiler_params=pltpu.CompilerParams(
            dimension_semantics=("parallel", "arbitrary"),
            vmem_limit_bytes=vmem_limit,
        ),
        cost_estimate=pl.CostEstimate(
            flops=int(flops), transcendentals=0, bytes_accessed=int(bytes_accessed)),
    )(xm, tm, *mats)

    return jnp.sum(out)


# ----------------------------- pure-JAX reference -------------------------------------


def _interp_bilinear_nchw(x, scale_factor):
    """F.interpolate(x, scale_factor, mode='bilinear', align_corners=False) in plain JAX."""
    N, C, H, W = x.shape
    h_out = int(math.floor(H * scale_factor))
    w_out = int(math.floor(W * scale_factor))

    def idx(in_size, out_size):
        j = jnp.arange(out_size, dtype=jnp.float32)
        src = (j + 0.5) * (1.0 / scale_factor) - 0.5
        src = jnp.maximum(src, 0.0)
        lo = jnp.minimum(jnp.floor(src), in_size - 1).astype(jnp.int32)
        hi = jnp.minimum(lo + 1, in_size - 1)
        lam = jnp.clip(src - lo.astype(jnp.float32), 0.0, 1.0)
        return lo, hi, lam

    h0, h1, lh = idx(H, h_out)
    w0, w1, lw = idx(W, w_out)
    xh = (x[:, :, h0, :] * (1.0 - lh)[None, None, :, None]
          + x[:, :, h1, :] * lh[None, None, :, None])
    y = xh[:, :, :, w0] * (1.0 - lw) + xh[:, :, :, w1] * lw
    return y


def _reference_loss(x, t, scales):
    loss = jnp.zeros((), jnp.float32)
    for s in scales:
        xi = _interp_bilinear_nchw(x.astype(jnp.float32), s)
        ti = _interp_bilinear_nchw(t.astype(jnp.float32), s)
        loss = loss + jnp.mean(jnp.abs(xi - ti))
    return loss


if __name__ == "__main__":
    # Small spectrogram-like shapes: (N, C, H, W)
    N, C, H, W = 2, 4, 16, 16
    scales = (0.5, 1.0, 2.0)

    key = jax.random.PRNGKey(0)
    kx, kt = jax.random.split(key)
    x = jax.random.normal(kx, (N, C, H, W), dtype=jnp.float32)
    t = jax.random.normal(kt, (N, C, H, W), dtype=jnp.float32)

    out = multiscale_spectrogram_loss(x, t, scales)
    out = jax.block_until_ready(out)

    ref = _reference_loss(x, t, scales)
    err = float(jnp.abs(out - ref))
    assert out.shape == (), out.shape
    assert err < 1e-4, err

    print("KERNEL_OK")
</pallas_src>

<mosaic_0001>
module attributes {stable_mosaic.version = 11 : i64} {
  func.func @kernel(%arg0: i32, %arg1: i32, %arg2: memref<8x16x16xf32, #tpu.memory_space<vmem>>, %arg3: memref<8x16x16xf32, #tpu.memory_space<vmem>>, %arg4: memref<16x8xf32, #tpu.memory_space<vmem>>, %arg5: memref<16x8xf32, #tpu.memory_space<vmem>>, %arg6: memref<16x16xf32, #tpu.memory_space<vmem>>, %arg7: memref<16x16xf32, #tpu.memory_space<vmem>>, %arg8: memref<16x32xf32, #tpu.memory_space<vmem>>, %arg9: memref<16x32xf32, #tpu.memory_space<vmem>>, %arg10: memref<1x1x1xf32, #tpu.memory_space<vmem>>) attributes {dimension_semantics = [#tpu.dimension_semantics<parallel>, #tpu.dimension_semantics<arbitrary>], iteration_bounds = array<i64: 1, 1>, scalar_prefetch = 0 : i64, scratch_operands = 0 : i64, tpu.core_type = #tpu.core_type<tc>, window_params = [{transform_indices = @transform_0, window_bounds = array<i64: 8, 16, 16>}, {transform_indices = @transform_1, window_bounds = array<i64: 8, 16, 16>}, {pipeline_mode = #tpu.pipeline_mode<synchronous>, transform_indices = @transform_2, window_bounds = array<i64: 16, 8>}, {pipeline_mode = #tpu.pipeline_mode<synchronous>, transform_indices = @transform_3, window_bounds = array<i64: 16, 8>}, {pipeline_mode = #tpu.pipeline_mode<synchronous>, transform_indices = @transform_4, window_bounds = array<i64: 16, 16>}, {pipeline_mode = #tpu.pipeline_mode<synchronous>, transform_indices = @transform_5, window_bounds = array<i64: 16, 16>}, {pipeline_mode = #tpu.pipeline_mode<synchronous>, transform_indices = @transform_6, window_bounds = array<i64: 16, 32>}, {pipeline_mode = #tpu.pipeline_mode<synchronous>, transform_indices = @transform_7, window_bounds = array<i64: 16, 32>}, {transform_indices = @transform_8, window_bounds = array<i64: 1, 1, 1>}]} {
    %c0_i32 = arith.constant 0 : i32
    %0 = arith.cmpi eq, %arg1, %c0_i32 : i32
    %1 = arith.extui %0 : i1 to i32
    %c0_i32_0 = arith.constant 0 : i32
    %2 = arith.cmpi ne, %1, %c0_i32_0 : i32
    scf.if %2 {
      %cst_36 = arith.constant 0.000000e+00 : f32
      %53 = vector.broadcast %cst_36 : f32 to vector<1x1xf32>
      %c0_37 = arith.constant 0 : index
      %c0_38 = arith.constant 0 : index
      %c0_39 = arith.constant 0 : index
      %54 = vector.load %arg10[%c0_37, %c0_38, %c0_39] : memref<1x1x1xf32, #tpu.memory_space<vmem>>, vector<1x1x1xf32>
      %55 = vector.shape_cast %54 : vector<1x1x1xf32> to vector<1x1xf32>
      %56 = vector.shape_cast %53 : vector<1x1xf32> to vector<1x1x1xf32>
      tpu.vector_store %arg10[%c0_37, %c0_38, %c0_39], %56 {strides = array<i32>} : memref<1x1x1xf32, #tpu.memory_space<vmem>>, vector<1x1x1xf32>,
    } else {
    }
    %c0 = arith.constant 0 : index
    %c0_1 = arith.constant 0 : index
    %c0_2 = arith.constant 0 : index
    %3 = vector.load %arg2[%c0, %c0_1, %c0_2] : memref<8x16x16xf32, #tpu.memory_space<vmem>>, vector<8x16x16xf32>
    %c0_3 = arith.constant 0 : index
    %c0_4 = arith.constant 0 : index
    %c0_5 = arith.constant 0 : index
    %4 = vector.load %arg3[%c0_3, %c0_4, %c0_5] : memref<8x16x16xf32, #tpu.memory_space<vmem>>, vector<8x16x16xf32>
    %5 = arith.subf %3, %4 : vector<8x16x16xf32>
    %6 = vector.shape_cast %5 : vector<8x16x16xf32> to vector<128x16xf32>
    %cst = arith.constant 0.000000e+00 : f32
    %7 = vector.broadcast %cst : f32 to vector<1x1xf32>
    %c0_6 = arith.constant 0 : index
    %c0_7 = arith.constant 0 : index
    %8 = vector.load %arg4[%c0_6, %c0_7] : memref<16x8xf32, #tpu.memory_space<vmem>>, vector<16x8xf32>
    %c0_8 = arith.constant 0 : index
    %c0_9 = arith.constant 0 : index
    %9 = vector.load %arg5[%c0_8, %c0_9] : memref<16x8xf32, #tpu.memory_space<vmem>>, vector<16x8xf32>
    %cst_10 = arith.constant dense<0.000000e+00> : vector<128x8xf32>
    %10 = tpu.matmul %6, %8, %cst_10 {dimension_numbers = #tpu.dot_dimension_numbers<[1], [0], [0], [1], [0, 0, 1, 1], [], []>} : vector<128x16xf32>, vector<16x8xf32>, vector<128x8xf32> -> vector<128x8xf32>
    %11 = vector.shape_cast %10 : vector<128x8xf32> to vector<8x16x8xf32>
    %12 = tpu.transpose %11, [0, 2, 1] : vector<8x16x8xf32> -> vector<8x8x16xf32>
    %13 = vector.shape_cast %12 : vector<8x8x16xf32> to vector<64x16xf32>
    %cst_11 = arith.constant dense<0.000000e+00> : vector<64x8xf32>
    %14 = tpu.matmul %13, %9, %cst_11 {dimension_numbers = #tpu.dot_dimension_numbers<[1], [0], [0], [1], [0, 0, 1, 1], [], []>} : vector<64x16xf32>, vector<16x8xf32>, vector<64x8xf32> -> vector<64x8xf32>
    %15 = math.absf %14 : vector<64x8xf32>
    %cst_12 = arith.constant dense<0.000000e+00> : vector<64xf32>
    %16 = vector.multi_reduction <add>, %15, %cst_12 [1] : vector<64x8xf32> to vector<64xf32>
    %17 = vector.shape_cast %16 : vector<64xf32> to vector<64x1xf32>
    %cst_13 = arith.constant dense<0.000000e+00> : vector<1xf32>
    %18 = vector.multi_reduction <add>, %17, %cst_13 [0] : vector<64x1xf32> to vector<1xf32>
    %19 = vector.shape_cast %18 : vector<1xf32> to vector<1x1xf32>
    %20 = arith.addf %7, %19 : vector<1x1xf32>
    %c0_14 = arith.constant 0 : index
    %c0_15 = arith.constant 0 : index
    %21 = vector.load %arg6[%c0_14, %c0_15] : memref<16x16xf32, #tpu.memory_space<vmem>>, vector<16x16xf32>
    %c0_16 = arith.constant 0 : index
    %c0_17 = arith.constant 0 : index
    %22 = vector.load %arg7[%c0_16, %c0_17] : memref<16x16xf32, #tpu.memory_space<vmem>>, vector<16x16xf32>
    %cst_18 = arith.constant dense<0.000000e+00> : vector<128x16xf32>
    %23 = tpu.matmul %6, %21, %cst_18 {dimension_numbers = #tpu.dot_dimension_numbers<[1], [0], [0], [1], [0, 0, 1, 1], [], []>} : vector<128x16xf32>, vector<16x16xf32>, vector<128x16xf32> -> vector<128x16xf32>
    %24 = vector.shape_cast %23 : vector<128x16xf32> to vector<8x16x16xf32>
    %25 = tpu.transpose %24, [0, 2, 1] : vector<8x16x16xf32> -> vector<8x16x16xf32>
    %26 = vector.shape_cast %25 : vector<8x16x16xf32> to vector<128x16xf32>
    %cst_19 = arith.constant dense<0.000000e+00> : vector<128x16xf32>
    %27 = tpu.matmul %26, %22, %cst_19 {dimension_numbers = #tpu.dot_dimension_numbers<[1], [0], [0], [1], [0, 0, 1, 1], [], []>} : vector<128x16xf32>, vector<16x16xf32>, vector<128x16xf32> -> vector<128x16xf32>
    %28 = math.absf %27 : vector<128x16xf32>
    %cst_20 = arith.constant dense<0.000000e+00> : vector<128xf32>
    %29 = vector.multi_reduction <add>, %28, %cst_20 [1] : vector<128x16xf32> to vector<128xf32>
    %30 = vector.shape_cast %29 : vector<128xf32> to vector<128x1xf32>
    %cst_21 = arith.constant dense<0.000000e+00> : vector<1xf32>
    %31 = vector.multi_reduction <add>, %30, %cst_21 [0] : vector<128x1xf32> to vector<1xf32>
    %32 = vector.shape_cast %31 : vector<1xf32> to vector<1x1xf32>
    %33 = arith.addf %20, %32 : vector<1x1xf32>
    %c0_22 = arith.constant 0 : index
    %c0_23 = arith.constant 0 : index
    %34 = vector.load %arg8[%c0_22, %c0_23] : memref<16x32xf32, #tpu.memory_space<vmem>>, vector<16x32xf32>
    %c0_24 = arith.constant 0 : index
    %c0_25 = arith.constant 0 : index
    %35 = vector.load %arg9[%c0_24, %c0_25] : memref<16x32xf32, #tpu.memory_space<vmem>>, vector<16x32xf32>
    %cst_26 = arith.constant dense<0.000000e+00> : vector<128x32xf32>
    %36 = tpu.matmul %6, %34, %cst_26 {dimension_numbers = #tpu.dot_dimension_numbers<[1], [0], [0], [1], [0, 0, 1, 1], [], []>} : vector<128x16xf32>, vector<16x32xf32>, vector<128x32xf32> -> vector<128x32xf32>
    %37 = vector.shape_cast %36 : vector<128x32xf32> to vector<8x16x32xf32>
    %38 = tpu.transpose %37, [0, 2, 1] : vector<8x16x32xf32> -> vector<8x32x16xf32>
    %39 = vector.shape_cast %38 : vector<8x32x16xf32> to vector<256x16xf32>
    %cst_27 = arith.constant dense<0.000000e+00> : vector<256x32xf32>
    %40 = tpu.matmul %39, %35, %cst_27 {dimension_numbers = #tpu.dot_dimension_numbers<[1], [0], [0], [1], [0, 0, 1, 1], [], []>} : vector<256x16xf32>, vector<16x32xf32>, vector<256x32xf32> -> vector<256x32xf32>
    %41 = math.absf %40 : vector<256x32xf32>
    %cst_28 = arith.constant dense<0.000000e+00> : vector<256xf32>
    %42 = vector.multi_reduction <add>, %41, %cst_28 [1] : vector<256x32xf32> to vector<256xf32>
    %43 = vector.shape_cast %42 : vector<256xf32> to vector<256x1xf32>
    %cst_29 = arith.constant dense<0.000000e+00> : vector<1xf32>
    %44 = vector.multi_reduction <add>, %43, %cst_29 [0] : vector<256x1xf32> to vector<1xf32>
    %45 = vector.shape_cast %44 : vector<1xf32> to vector<1x1xf32>
    %46 = arith.addf %33, %45 : vector<1x1xf32>
    %c0_30 = arith.constant 0 : index
    %c0_31 = arith.constant 0 : index
    %c0_32 = arith.constant 0 : index
    %47 = vector.load %arg10[%c0_30, %c0_31, %c0_32] : memref<1x1x1xf32, #tpu.memory_space<vmem>>, vector<1x1x1xf32>
    %48 = vector.shape_cast %47 : vector<1x1x1xf32> to vector<1x1xf32>
    %49 = arith.addf %48, %46 : vector<1x1xf32>
    %c0_33 = arith.constant 0 : index
    %c0_34 = arith.constant 0 : index
    %c0_35 = arith.constant 0 : index
    %50 = vector.load %arg10[%c0_33, %c0_34, %c0_35] : memref<1x1x1xf32, #tpu.memory_space<vmem>>, vector<1x1x1xf32>
    %51 = vector.shape_cast %50 : vector<1x1x1xf32> to vector<1x1xf32>
    %52 = vector.shape_cast %49 : vector<1x1xf32> to vector<1x1x1xf32>
    tpu.vector_store %arg10[%c0_33, %c0_34, %c0_35], %52 {strides = array<i32>} : memref<1x1x1xf32, #tpu.memory_space<vmem>>, vector<1x1x1xf32>,
    return
  }
  func.func @transform_0(%arg0: i32, %arg1: i32) -> (i32, i32, i32) {
    %c1_i32 = arith.constant 1 : i32
    %0 = arith.muli %arg0, %c1_i32 : i32
    %1 = arith.addi %0, %arg1 : i32
    %c0_i32 = arith.constant 0 : i32
    %c0_i32_0 = arith.constant 0 : i32
    %c0_i32_1 = arith.constant 0 : i32
    return %1, %c0_i32, %c0_i32_0 : i32, i32, i32
  }
  func.func @transform_1(%arg0: i32, %arg1: i32) -> (i32, i32, i32) {
    %c1_i32 = arith.constant 1 : i32
    %0 = arith.muli %arg0, %c1_i32 : i32
    %1 = arith.addi %0, %arg1 : i32
    %c0_i32 = arith.constant 0 : i32
    %c0_i32_0 = arith.constant 0 : i32
    %c0_i32_1 = arith.constant 0 : i32
    return %1, %c0_i32, %c0_i32_0 : i32, i32, i32
  }
  func.func @transform_2(%arg0: i32, %arg1: i32) -> (i32, i32) {
    %c0_i32 = arith.constant 0 : i32
    %c0_i32_0 = arith.constant 0 : i32
    %c0_i32_1 = arith.constant 0 : i32
    return %c0_i32, %c0_i32_0 : i32, i32
  }
  func.func @transform_3(%arg0: i32, %arg1: i32) -> (i32, i32) {
    %c0_i32 = arith.constant 0 : i32
    %c0_i32_0 = arith.constant 0 : i32
    %c0_i32_1 = arith.constant 0 : i32
    return %c0_i32, %c0_i32_0 : i32, i32
  }
  func.func @transform_4(%arg0: i32, %arg1: i32) -> (i32, i32) {
    %c0_i32 = arith.constant 0 : i32
    %c0_i32_0 = arith.constant 0 : i32
    %c0_i32_1 = arith.constant 0 : i32
    return %c0_i32, %c0_i32_0 : i32, i32
  }
  func.func @transform_5(%arg0: i32, %arg1: i32) -> (i32, i32) {
    %c0_i32 = arith.constant 0 : i32
    %c0_i32_0 = arith.constant 0 : i32
    %c0_i32_1 = arith.constant 0 : i32
    return %c0_i32, %c0_i32_0 : i32, i32
  }
  func.func @transform_6(%arg0: i32, %arg1: i32) -> (i32, i32) {
    %c0_i32 = arith.constant 0 : i32
    %c0_i32_0 = arith.constant 0 : i32
    %c0_i32_1 = arith.constant 0 : i32
    return %c0_i32, %c0_i32_0 : i32, i32
  }
  func.func @transform_7(%arg0: i32, %arg1: i32) -> (i32, i32) {
    %c0_i32 = arith.constant 0 : i32
    %c0_i32_0 = arith.constant 0 : i32
    %c0_i32_1 = arith.constant 0 : i32
    return %c0_i32, %c0_i32_0 : i32, i32
  }
  func.func @transform_8(%arg0: i32, %arg1: i32) -> (i32, i32, i32) {
    %c0_i32 = arith.constant 0 : i32
    %c0_i32_0 = arith.constant 0 : i32
    %c0_i32_1 = arith.constant 0 : i32
    return %arg0, %c0_i32, %c0_i32_0 : i32, i32, i32
  }
}

</mosaic_0001>

<llo_original>
// kernel: tpu_custom_call.1
$region0: #{tpu_custom_call.1}
  #allocation0 [shape = 'u32[]', space=smem, size = 0x4, offset = 0x4, fixed_abs, tag = 'smem constant byte address 0x4 - core index']
  #allocation1 [shape = 'u32[144,128]{1,0:T(1,128)}', space=vmem, size = 0x12000, scoped, tag = 'internal scratch']
  %s0 = inlined_call_operand.hbm [shape: f32[8,16,16], index: 0, kind: input, shape index: {}]
  %s1 = inlined_call_operand.hbm [shape: f32[8,16,16], index: 1, kind: input, shape index: {}]
  %s2 = inlined_call_operand.vmem [shape: f32[16,8], index: 2, kind: input, shape index: {}]
  %s3 = inlined_call_operand.vmem [shape: f32[16,8], index: 3, kind: input, shape index: {}]
  %s4 = inlined_call_operand.vmem [shape: f32[16,16], index: 4, kind: input, shape index: {}]
  %s5 = inlined_call_operand.vmem [shape: f32[16,16], index: 5, kind: input, shape index: {}]
  %s6 = inlined_call_operand.vmem [shape: f32[16,32], index: 6, kind: input, shape index: {}]
  %s7 = inlined_call_operand.vmem [shape: f32[16,32], index: 7, kind: input, shape index: {}]
  %s8 = inlined_call_operand.hbm [shape: f32[1,1,1], index: 8, kind: output, shape index: {}]
  %s9 = sld [smem:[#allocation0]]
  $region54: #{tpu_custom_call.1} parent=0
    _
  %s11 = ssub.s32 1, %s9
  %s12 = scalar_select 0, %s11, %s9
  $region1: #{tpu_custom_call.1} parent=0
    #allocation2 [shape = 'u8[65536]{0}', space=vmem, size = 0x10000, scoped, tag = 'input window, operand 0, single buffered']
    #allocation3 [shape = 's32[1]{0}', space=sflag, size = 0x4, scoped, tag = 'scoped memory for tpu_custom_call.1']
    #allocation4 [shape = 's32[1]{0}', space=sflag, size = 0x4, scoped, tag = 'scoped memory for tpu_custom_call.1']
    #allocation5 [shape = 'u8[65536]{0}', space=vmem, size = 0x10000, scoped, tag = 'input window, operand 1, single buffered']
    #allocation6 [shape = 's32[1]{0}', space=sflag, size = 0x4, scoped, tag = 'scoped memory for tpu_custom_call.1']
    #allocation7 [shape = 'u8[512]{0}', space=vmem, size = 0x400, scoped, tag = 'output window, operand 0, single buffered']
    %13 = vsyncpa [#allocation3], 0
    %14 = vsyncpa [#allocation6], 0
    %15 = vsyncpa [#allocation4], 0
    // Predicated region
    $region2: #{tpu_custom_call.1} parent=1 // pred_check
      _
    $region3: #{tpu_custom_call.1} parent=1 // pred_check_branch
      %17 = sbr.rel (0) target = $region5
    $region4: #{tpu_custom_call.1} parent=1 // pred_region
      %s18 = sadd.s32 0, 0
      %s19 = smul.u32 8, %s18
      %s21 = ssub.s32 2048, 2048
      %22 = vsyncadd [#allocation3], %s21
      %s23 = smul.addr %s19, 2
      %s24 = smul.addr %s23, 128
      %s25 = scalar_lea.hbm %s0, %s24
      %s26 = sshll.u32 [#allocation2], 4
      %s27 = int_to_ptr.vmem [resolvable:$true] %s26
      %32 = dma.hbm_to_vmem [thread:$0]  %s25, 2048, %s27, [#allocation3], 128, 128, 8
    $region5: #{tpu_custom_call.1} parent=1 // pred_fallthru
      _
    // Predicated region
    $region6: #{tpu_custom_call.1} parent=1 // pred_check
      _
    $region7: #{tpu_custom_call.1} parent=1 // pred_check_branch
      %34 = sbr.rel (0) target = $region9
    $region8: #{tpu_custom_call.1} parent=1 // pred_region
      %s35 = sadd.s32 0, 0
      %s36 = smul.u32 8, %s35
      %s38 = ssub.s32 2048, 2048
      %39 = vsyncadd [#allocation6], %s38
      %s40 = smul.addr %s36, 2
      %s41 = smul.addr %s40, 128
      %s42 = scalar_lea.hbm %s1, %s41
      %s43 = sshll.u32 [#allocation5], 4
      %s44 = int_to_ptr.vmem [resolvable:$true] %s43
      %49 = dma.hbm_to_vmem [thread:$0]  %s42, 2048, %s44, [#allocation6], 128, 128, 8
    $region9: #{tpu_custom_call.1} parent=1 // pred_fallthru
      _
    // Predicated region
    $region10: #{tpu_custom_call.1} parent=1 // pred_check
      _
    $region11: #{tpu_custom_call.1} parent=1 // pred_check_branch
      %51 = sbr.rel (0) target = $region13
    $region12: #{tpu_custom_call.1} parent=1 // pred_region
      _
    $region13: #{tpu_custom_call.1} parent=1 // pred_fallthru
      _
    // Predicated region
    $region14: #{tpu_custom_call.1} parent=1 // pred_check
      _
    $region15: #{tpu_custom_call.1} parent=1 // pred_check_branch
      %53 = sbr.rel (0) target = $region17
    $region16: #{tpu_custom_call.1} parent=1 // pred_region
      _
    $region17: #{tpu_custom_call.1} parent=1 // pred_fallthru
      _
    // Predicated region
    $region18: #{tpu_custom_call.1} parent=1 // pred_check
      _
    $region19: #{tpu_custom_call.1} parent=1 // pred_check_branch
      %55 = sbr.rel (0) target = $region21
    $region20: #{tpu_custom_call.1} parent=1 // pred_region
      _
    $region21: #{tpu_custom_call.1} parent=1 // pred_fallthru
      _
    // Predicated region
    $region22: #{tpu_custom_call.1} parent=1 // pred_check
      _
    $region23: #{tpu_custom_call.1} parent=1 // pred_check_branch
      %57 = sbr.rel (0) target = $region25
    $region24: #{tpu_custom_call.1} parent=1 // pred_region
      _
    $region25: #{tpu_custom_call.1} parent=1 // pred_fallthru
      _
    // Predicated region
    $region26: #{tpu_custom_call.1} parent=1 // pred_check
      _
    $region27: #{tpu_custom_call.1} parent=1 // pred_check_branch
      %59 = sbr.rel (0) target = $region29
    $region28: #{tpu_custom_call.1} parent=1 // pred_region
      _
    $region29: #{tpu_custom_call.1} parent=1 // pred_fallthru
      _
    // Predicated region
    $region30: #{tpu_custom_call.1} parent=1 // pred_check
      _
    $region31: #{tpu_custom_call.1} parent=1 // pred_check_branch
      %61 = sbr.rel (0) target = $region33
    $region32: #{tpu_custom_call.1} parent=1 // pred_region
      _
    $region33: #{tpu_custom_call.1} parent=1 // pred_fallthru
      _
    // Predicated region
    $region34: #{tpu_custom_call.1} parent=1 // pred_check
      _
    $region35: #{tpu_custom_call.1} parent=1 // pred_check_branch
      %63 = sbr.rel (0) target = $region37
    $region36: #{tpu_custom_call.1} parent=1 // pred_region
      %64 = dma.done [#allocation3], 2048
    $region37: #{tpu_custom_call.1} parent=1 // pred_fallthru
      _
    // Predicated region
    $region38: #{tpu_custom_call.1} parent=1 // pred_check
      _
    $region39: #{tpu_custom_call.1} parent=1 // pred_check_branch
      %66 = sbr.rel (0) target = $region41
    $region40: #{tpu_custom_call.1} parent=1 // pred_region
      %67 = dma.done [#allocation6], 2048
    $region41: #{tpu_custom_call.1} parent=1 // pred_fallthru
      _
    %s68 = sadd.s32 0, 0
    %s69 = smul.u32 8, %s68
    %s70 = sadd.s32 0, 0
    %s71 = smul.u32 8, %s70
    %p72 = scmp.eq.s32.totalorder 0, 0
    // Predicated region
    $region42: #{tpu_custom_call.1} parent=1 // pred_check
      %p73 = pneg %p72
    $region43: #{tpu_custom_call.1} parent=1 // pred_check_branch
      %75 = sbr.rel (%p73) target = $region45
    $region44: #{tpu_custom_call.1} parent=1 // pred_region
      %vm76 = vcmask 0
      %77 = vst.msk [vmem:[#allocation7] sm:$0x1] %vm76, 0.0
    $region45: #{tpu_custom_call.1} parent=1 // pred_fallthru
      _
    %v78 = vld [vmem:[#allocation2] sm:$0xff]
    %v79 = vld [vmem:[#allocation2 + $0x8] sm:$0xff]
    %v80 = vld [vmem:[#allocation2 + $0x10] sm:$0xff]
    %v81 = vld [vmem:[#allocation2 + $0x18] sm:$0xff]
    %v82 = vld [vmem:[#allocation2 + $0x20] sm:$0xff]
    %v83 = vld [vmem:[#allocation2 + $0x28] sm:$0xff]
    %v84 = vld [vmem:[#allocation2 + $0x30] sm:$0xff]
    %v85 = vld [vmem:[#allocation2 + $0x38] sm:$0xff]
    %v86 = vld [vmem:[#allocation2 + $0x40] sm:$0xff]
    %v87 = vld [vmem:[#allocation2 + $0x48] sm:$0xff]
    %v88 = vld [vmem:[#allocation2 + $0x50] sm:$0xff]
    %v89 = vld [vmem:[#allocation2 + $0x58] sm:$0xff]
    %v90 = vld [vmem:[#allocation2 + $0x60] sm:$0xff]
    %v91 = vld [vmem:[#allocation2 + $0x68] sm:$0xff]
    %v92 = vld [vmem:[#allocation2 + $0x70] sm:$0xff]
    %v93 = vld [vmem:[#allocation2 + $0x78] sm:$0xff]
    %v94 = vld [vmem:[#allocation5] sm:$0xff]
    %v95 = vld [vmem:[#allocation5 + $0x8] sm:$0xff]
    %v96 = vld [vmem:[#allocation5 + $0x10] sm:$0xff]
    %v97 = vld [vmem:[#allocation5 + $0x18] sm:$0xff]
    %v98 = vld [vmem:[#allocation5 + $0x20] sm:$0xff]
    %v99 = vld [vmem:[#allocation5 + $0x28] sm:$0xff]
    %v100 = vld [vmem:[#allocation5 + $0x30] sm:$0xff]
    %v101 = vld [vmem:[#allocation5 + $0x38] sm:$0xff]
    %v102 = vld [vmem:[#allocation5 + $0x40] sm:$0xff]
    %v103 = vld [vmem:[#allocation5 + $0x48] sm:$0xff]
    %v104 = vld [vmem:[#allocation5 + $0x50] sm:$0xff]
    %v105 = vld [vmem:[#allocation5 + $0x58] sm:$0xff]
    %v106 = vld [vmem:[#allocation5 + $0x60] sm:$0xff]
    %v107 = vld [vmem:[#allocation5 + $0x68] sm:$0xff]
    %v108 = vld [vmem:[#allocation5 + $0x70] sm:$0xff]
    %v109 = vld [vmem:[#allocation5 + $0x78] sm:$0xff]
    %v110 = vsub.f32 %v78, %v94
    %v111 = vsub.f32 %v79, %v95
    %v112 = vsub.f32 %v80, %v96
    %v113 = vsub.f32 %v81, %v97
    %v114 = vsub.f32 %v82, %v98
    %v115 = vsub.f32 %v83, %v99
    %v116 = vsub.f32 %v84, %v100
    %v117 = vsub.f32 %v85, %v101
    %v118 = vsub.f32 %v86, %v102
    %v119 = vsub.f32 %v87, %v103
    %v120 = vsub.f32 %v88, %v104
    %v121 = vsub.f32 %v89, %v105
    %v122 = vsub.f32 %v90, %v106
    %v123 = vsub.f32 %v91, %v107
    %v124 = vsub.f32 %v92, %v108
    %v125 = vsub.f32 %v93, %v109
    %v126 = vld [vmem:[%s2] sm:$0xff]
    %v127 = vld [vmem:[%s2 + $0x8] sm:$0xff]
    %v128 = vld [vmem:[%s3] sm:$0xff]
    %v129 = vld [vmem:[%s3 + $0x8] sm:$0xff]
    %vm130 = vcmask 130048
    %v132 = vsel %vm130, %v110, 0
    %v135 = vsel %vm130, %v111, 0
    %v138 = vsel %vm130, %v112, 0
    %v141 = vsel %vm130, %v113, 0
    %v144 = vsel %vm130, %v114, 0
    %v147 = vsel %vm130, %v115, 0
    %v150 = vsel %vm130, %v116, 0
    %v153 = vsel %vm130, %v117, 0
    %v156 = vsel %vm130, %v118, 0
    %v159 = vsel %vm130, %v119, 0
    %v162 = vsel %vm130, %v120, 0
    %v165 = vsel %vm130, %v121, 0
    %v168 = vsel %vm130, %v122, 0
    %v171 = vsel %vm130, %v123, 0
    %v174 = vsel %vm130, %v124, 0
    %v177 = vsel %vm130, %v125, 0
    %179 = vmatprep.subr.mxu0 0.0
    %180 = vmatpush1.msra.mxu0 %v126
    %181 = vmatprep.subr.mxu0 0.0
    %182 = vmatpush1.msra.mxu0 %v127
    %183 = vmatprep.subr.mxu0 0.0
    %184 = vmatpush1.msra.mxu0 0.0
    %185 = vmatprep.subr.mxu0 0.0
    %186 = vmatpush1.msra.mxu0 0.0
    %187 = vmatprep.subr.mxu0 0.0
    %188 = vmatpush1.msra.mxu0 0.0
    %189 = vmatprep.subr.mxu0 0.0
    %190 = vmatpush1.msra.mxu0 0.0
    %191 = vmatprep.subr.mxu0 0.0
    %192 = vmatpush1.msra.mxu0 0.0
    %193 = vmatprep.subr.mxu0 0.0
    %194 = vmatpush1.msra.mxu0 0.0
    %195 = vmatprep.subr.mxu0 0.0
    %196 = vmatpush1.msra.mxu0 0.0
    %197 = vmatprep.subr.mxu0 0.0
    %198 = vmatpush1.msra.mxu0 0.0
    %199 = vmatprep.subr.mxu0 0.0
    %200 = vmatpush1.msra.mxu0 0.0
    %201 = vmatprep.subr.mxu0 0.0
    %202 = vmatpush1.msra.mxu0 0.0
    %203 = vmatprep.subr.mxu0 0.0
    %204 = vmatpush1.msra.mxu0 0.0
    %205 = vmatprep.subr.mxu0 0.0
    %206 = vmatpush1.msra.mxu0 0.0
    %207 = vmatprep.subr.mxu0 0.0
    %208 = vmatpush1.msra.mxu0 0.0
    %209 = vmatprep.subr.mxu0 0.0
    %210 = vmatpush1.msra.mxu0 0.0
    %211 = vmatprep.subr.mxu0 0.0
    %212 = vmatpush1.msra.mxu0 0.0
    %213 = vmatprep.subr.mxu0 0.0
    %214 = vmatpush1.msra.mxu0 0.0
    %215 = vmatprep.subr.mxu0 0.0
    %216 = vmatpush1.msra.mxu0 0.0
    %217 = vmatprep.subr.mxu0 0.0
    %218 = vmatpush1.msra.mxu0 0.0
    %219 = vmatprep.subr.mxu0 0.0
    %220 = vmatpush1.msra.mxu0 0.0
    %221 = vmatprep.subr.mxu0 0.0
    %222 = vmatpush1.msra.mxu0 0.0
    %223 = vmatprep.subr.mxu0 0.0
    %224 = vmatpush1.msra.mxu0 0.0
    %225 = vmatprep.subr.mxu0 0.0
    %226 = vmatpush1.msra.mxu0 0.0
    %227 = vmatprep.subr.mxu0 0.0
    %228 = vmatpush1.msra.mxu0 0.0
    %229 = vmatprep.subr.mxu0 0.0
    %230 = vmatpush1.msra.mxu0 0.0
    %231 = vmatprep.subr.mxu0 0.0
    %232 = vmatpush1.msra.mxu0 0.0
    %233 = vmatprep.subr.mxu0 0.0
    %234 = vmatpush1.msra.mxu0 0.0
    %235 = vmatprep.subr.mxu0 0.0
    %236 = vmatpush1.msra.mxu0 0.0
    %237 = vmatprep.subr.mxu0 0.0
    %238 = vmatpush1.msra.mxu0 0.0
    %239 = vmatprep.subr.mxu0 0.0
    %240 = vmatpush1.msra.mxu0 0.0
    %241 = vmatprep.subr.mxu0 0.0
    %242 = vmatpush1.msra.mxu0 0.0
    %243 = vmatprep.mubr.f32.mxu0 0.0
    %244 = vmatmul.mubr.f32.gmra.mrb[0].mxu0 %v132
    %v245 = vpop.f32.mrb[0].mxu0
    %v246 = vadd.f32 0.0, %v245
    %v247 = vpop.f32.mrb[0].mxu0
    %248 = vmatprep.mubr.f32.mxu0 0.0
    %249 = vmatmul.mubr.f32.gmra.mrb[0].mxu0 %v135
    %v250 = vpop.f32.mrb[0].mxu0
    %v251 = vadd.f32 0.0, %v250
    %v252 = vpop.f32.mrb[0].mxu0
    %253 = vmatprep.mubr.f32.mxu0 0.0
    %254 = vmatmul.mubr.f32.gmra.mrb[0].mxu0 %v138
    %v255 = vpop.f32.mrb[0].mxu0
    %v256 = vadd.f32 0.0, %v255
    %v257 = vpop.f32.mrb[0].mxu0
    %258 = vmatprep.mubr.f32.mxu0 0.0
    %259 = vmatmul.mubr.f32.gmra.mrb[0].mxu0 %v141
    %v260 = vpop.f32.mrb[0].mxu0
    %v261 = vadd.f32 0.0, %v260
    %v262 = vpop.f32.mrb[0].mxu0
    %263 = vmatprep.mubr.f32.mxu0 0.0
    %264 = vmatmul.mubr.f32.gmra.mrb[0].mxu0 %v144
    %v265 = vpop.f32.mrb[0].mxu0
    %v266 = vadd.f32 0.0, %v265
    %v267 = vpop.f32.mrb[0].mxu0
    %268 = vmatprep.mubr.f32.mxu0 0.0
    %269 = vmatmul.mubr.f32.gmra.mrb[0].mxu0 %v147
    %v270 = vpop.f32.mrb[0].mxu0
    %v271 = vadd.f32 0.0, %v270
    %v272 = vpop.f32.mrb[0].mxu0
    %273 = vmatprep.mubr.f32.mxu0 0.0
    %274 = vmatmul.mubr.f32.gmra.mrb[0].mxu0 %v150
    %v275 = vpop.f32.mrb[0].mxu0
    %v276 = vadd.f32 0.0, %v275
    %v277 = vpop.f32.mrb[0].mxu0
    %278 = vmatprep.mubr.f32.mxu0 0.0
    %279 = vmatmul.mubr.f32.gmra.mrb[0].mxu0 %v153
    %v280 = vpop.f32.mrb[0].mxu0
    %v281 = vadd.f32 0.0, %v280
    %v282 = vpop.f32.mrb[0].mxu0
    %283 = vmatprep.mubr.f32.mxu0 0.0
    %284 = vmatmul.mubr.f32.gmra.mrb[0].mxu0 %v156
    %v285 = vpop.f32.mrb[0].mxu0
    %v286 = vadd.f32 0.0, %v285
    %v287 = vpop.f32.mrb[0].mxu0
    %288 = vmatprep.mubr.f32.mxu0 0.0
    %289 = vmatmul.mubr.f32.gmra.mrb[0].mxu0 %v159
    %v290 = vpop.f32.mrb[0].mxu0
    %v291 = vadd.f32 0.0, %v290
    %v292 = vpop.f32.mrb[0].mxu0
    %293 = vmatprep.mubr.f32.mxu0 0.0
    %294 = vmatmul.mubr.f32.gmra.mrb[0].mxu0 %v162
    %v295 = vpop.f32.mrb[0].mxu0
    %v296 = vadd.f32 0.0, %v295
    %v297 = vpop.f32.mrb[0].mxu0
    %298 = vmatprep.mubr.f32.mxu0 0.0
    %299 = vmatmul.mubr.f32.gmra.mrb[0].mxu0 %v165
    %v300 = vpop.f32.mrb[0].mxu0
    %v301 = vadd.f32 0.0, %v300
    %v302 = vpop.f32.mrb[0].mxu0
    %303 = vmatprep.mubr.f32.mxu0 0.0
    %304 = vmatmul.mubr.f32.gmra.mrb[0].mxu0 %v168
    %v305 = vpop.f32.mrb[0].mxu0
    %v306 = vadd.f32 0.0, %v305
    %v307 = vpop.f32.mrb[0].mxu0
    %308 = vmatprep.mubr.f32.mxu0 0.0
    %309 = vmatmul.mubr.f32.gmra.mrb[0].mxu0 %v171
    %v310 = vpop.f32.mrb[0].mxu0
    %v311 = vadd.f32 0.0, %v310
    %v312 = vpop.f32.mrb[0].mxu0
    %313 = vmatprep.mubr.f32.mxu0 0.0
    %314 = vmatmul.mubr.f32.gmra.mrb[0].mxu0 %v174
    %v315 = vpop.f32.mrb[0].mxu0
    %v316 = vadd.f32 0.0, %v315
    %v317 = vpop.f32.mrb[0].mxu0
    %318 = vmatprep.mubr.f32.mxu0 0.0
    %319 = vmatmul.mubr.f32.gmra.mrb[0].mxu0 %v177
    %v320 = vpop.f32.mrb[0].mxu0
    %v321 = vadd.f32 0.0, %v320
    %v322 = vpop.f32.mrb[0].mxu0
    %323 = vdwg.mxu0
    %324 = vxpose.xlu0.b32.start [1/16] %v246, 128
    %325 = vxpose.xlu0.b32.cont [2/16] %v251, 128
    %326 = vxpose.xlu0.b32.cont [3/16] 0.0, 128
    %327 = vxpose.xlu0.b32.cont [4/16] 0.0, 128
    %328 = vxpose.xlu0.b32.cont [5/16] 0.0, 128
    %329 = vxpose.xlu0.b32.cont [6/16] 0.0, 128
    %330 = vxpose.xlu0.b32.cont [7/16] 0.0, 128
    %331 = vxpose.xlu0.b32.cont [8/16] 0.0, 128
    %332 = vxpose.xlu0.b32.cont [9/16] 0.0, 128
    %333 = vxpose.xlu0.b32.cont [10/16] 0.0, 128
    %334 = vxpose.xlu0.b32.cont [11/16] 0.0, 128
    %335 = vxpose.xlu0.b32.cont [12/16] 0.0, 128
    %336 = vxpose.xlu0.b32.cont [13/16] 0.0, 128
    %337 = vxpose.xlu0.b32.cont [14/16] 0.0, 128
    %338 = vxpose.xlu0.b32.cont [15/16] 0.0, 128
    %339 = vxpose.xlu0.b32.end [16/16] 0.0, 128
    %v340 = vpop.trf.xlu0
    %v341 = vpop.trf.xlu0
    %v342 = vpop.trf.xlu0
    %v343 = vpop.trf.xlu0
    %v344 = vpop.trf.xlu0
    %v345 = vpop.trf.xlu0
    %v346 = vpop.trf.xlu0
    %v347 = vpop.trf.xlu0
    %v348 = vpop.trf.xlu0
    %v349 = vpop.trf.xlu0
    %v350 = vpop.trf.xlu0
    %v351 = vpop.trf.xlu0
    %v352 = vpop.trf.xlu0
    %v353 = vpop.trf.xlu0
    %v354 = vpop.trf.xlu0
    %v355 = vpop.trf.xlu0
    %356 = vxpose.xlu0.b32.start [1/16] %v256, 128
    %357 = vxpose.xlu0.b32.cont [2/16] %v261, 128
    %358 = vxpose.xlu0.b32.cont [3/16] 0.0, 128
    %359 = vxpose.xlu0.b32.cont [4/16] 0.0, 128
    %360 = vxpose.xlu0.b32.cont [5/16] 0.0, 128
    %361 = vxpose.xlu0.b32.cont [6/16] 0.0, 128
    %362 = vxpose.xlu0.b32.cont [7/16] 0.0, 128
    %363 = vxpose.xlu0.b32.cont [8/16] 0.0, 128
    %364 = vxpose.xlu0.b32.cont [9/16] 0.0, 128
    %365 = vxpose.xlu0.b32.cont [10/16] 0.0, 128
    %366 = vxpose.xlu0.b32.cont [11/16] 0.0, 128
    %367 = vxpose.xlu0.b32.cont [12/16] 0.0, 128
    %368 = vxpose.xlu0.b32.cont [13/16] 0.0, 128
    %369 = vxpose.xlu0.b32.cont [14/16] 0.0, 128
    %370 = vxpose.xlu0.b32.cont [15/16] 0.0, 128
    %371 = vxpose.xlu0.b32.end [16/16] 0.0, 128
    %v372 = vpop.trf.xlu0
    %v373 = vpop.trf.xlu0
    %v374 = vpop.trf.xlu0
    %v375 = vpop.trf.xlu0
    %v376 = vpop.trf.xlu0
    %v377 = vpop.trf.xlu0
    %v378 = vpop.trf.xlu0
    %v379 = vpop.trf.xlu0
    %v380 = vpop.trf.xlu0
    %v381 = vpop.trf.xlu0
    %v382 = vpop.trf.xlu0
    %v383 = vpop.trf.xlu0
    %v384 = vpop.trf.xlu0
    %v385 = vpop.trf.xlu0
    %v386 = vpop.trf.xlu0
    %v387 = vpop.trf.xlu0
    %388 = vxpose.xlu0.b32.start [1/16] %v266, 128
    %389 = vxpose.xlu0.b32.cont [2/16] %v271, 128
    %390 = vxpose.xlu0.b32.cont [3/16] 0.0, 128
    %391 = vxpose.xlu0.b32.cont [4/16] 0.0, 128
    %392 = vxpose.xlu0.b32.cont [5/16] 0.0, 128
    %393 = vxpose.xlu0.b32.cont [6/16] 0.0, 128
    %394 = vxpose.xlu0.b32.cont [7/16] 0.0, 128
    %395 = vxpose.xlu0.b32.cont [8/16] 0.0, 128
    %396 = vxpose.xlu0.b32.cont [9/16] 0.0, 128
    %397 = vxpose.xlu0.b32.cont [10/16] 0.0, 128
    %398 = vxpose.xlu0.b32.cont [11/16] 0.0, 128
    %399 = vxpose.xlu0.b32.cont [12/16] 0.0, 128
    %400 = vxpose.xlu0.b32.cont [13/16] 0.0, 128
    %401 = vxpose.xlu0.b32.cont [14/16] 0.0, 128
    %402 = vxpose.xlu0.b32.cont [15/16] 0.0, 128
    %403 = vxpose.xlu0.b32.end [16/16] 0.0, 128
    %v404 = vpop.trf.xlu0
    %v405 = vpop.trf.xlu0
    %v406 = vpop.trf.xlu0
    %v407 = vpop.trf.xlu0
    %v408 = vpop.trf.xlu0
    %v409 = vpop.trf.xlu0
    %v410 = vpop.trf.xlu0
    %v411 = vpop.trf.xlu0
    %v412 = vpop.trf.xlu0
    %v413 = vpop.trf.xlu0
    %v414 = vpop.trf.xlu0
    %v415 = vpop.trf.xlu0
    %v416 = vpop.trf.xlu0
    %v417 = vpop.trf.xlu0
    %v418 = vpop.trf.xlu0
    %v419 = vpop.trf.xlu0
    %420 = vxpose.xlu0.b32.start [1/16] %v276, 128
    %421 = vxpose.xlu0.b32.cont [2/16] %v281, 128
    %422 = vxpose.xlu0.b32.cont [3/16] 0.0, 128
    %423 = vxpose.xlu0.b32.cont [4/16] 0.0, 128
    %424 = vxpose.xlu0.b32.cont [5/16] 0.0, 128
    %425 = vxpose.xlu0.b32.cont [6/16] 0.0, 128
    %426 = vxpose.xlu0.b32.cont [7/16] 0.0, 128
    %427 = vxpose.xlu0.b32.cont [8/16] 0.0, 128
    %428 = vxpose.xlu0.b32.cont [9/16] 0.0, 128
    %429 = vxpose.xlu0.b32.cont [10/16] 0.0, 128
    %430 = vxpose.xlu0.b32.cont [11/16] 0.0, 128
    %431 = vxpose.xlu0.b32.cont [12/16] 0.0, 128
    %432 = vxpose.xlu0.b32.cont [13/16] 0.0, 128
    %433 = vxpose.xlu0.b32.cont [14/16] 0.0, 128
    %434 = vxpose.xlu0.b32.cont [15/16] 0.0, 128
    %435 = vxpose.xlu0.b32.end [16/16] 0.0, 128
    %v436 = vpop.trf.xlu0
    %v437 = vpop.trf.xlu0
    %v438 = vpop.trf.xlu0
    %v439 = vpop.trf.xlu0
    %v440 = vpop.trf.xlu0
    %v441 = vpop.trf.xlu0
    %v442 = vpop.trf.xlu0
    %v443 = vpop.trf.xlu0
    %v444 = vpop.trf.xlu0
    %v445 = vpop.trf.xlu0
    %v446 = vpop.trf.xlu0
    %v447 = vpop.trf.xlu0
    %v448 = vpop.trf.xlu0
    %v449 = vpop.trf.xlu0
    %v450 = vpop.trf.xlu0
    %v451 = vpop.trf.xlu0
    %452 = vxpose.xlu0.b32.start [1/16] %v286, 128
    %453 = vxpose.xlu0.b32.cont [2/16] %v291, 128
    %454 = vxpose.xlu0.b32.cont [3/16] 0.0, 128
    %455 = vxpose.xlu0.b32.cont [4/16] 0.0, 128
    %456 = vxpose.xlu0.b32.cont [5/16] 0.0, 128
    %457 = vxpose.xlu0.b32.cont [6/16] 0.0, 128
    %458 = vxpose.xlu0.b32.cont [7/16] 0.0, 128
    %459 = vxpose.xlu0.b32.cont [8/16] 0.0, 128
    %460 = vxpose.xlu0.b32.cont [9/16] 0.0, 128
    %461 = vxpose.xlu0.b32.cont [10/16] 0.0, 128
    %462 = vxpose.xlu0.b32.cont [11/16] 0.0, 128
    %463 = vxpose.xlu0.b32.cont [12/16] 0.0, 128
    %464 = vxpose.xlu0.b32.cont [13/16] 0.0, 128
    %465 = vxpose.xlu0.b32.cont [14/16] 0.0, 128
    %466 = vxpose.xlu0.b32.cont [15/16] 0.0, 128
    %467 = vxpose.xlu0.b32.end [16/16] 0.0, 128
    %v468 = vpop.trf.xlu0
    %v469 = vpop.trf.xlu0
    %v470 = vpop.trf.xlu0
    %v471 = vpop.trf.xlu0
    %v472 = vpop.trf.xlu0
    %v473 = vpop.trf.xlu0
    %v474 = vpop.trf.xlu0
    %v475 = vpop.trf.xlu0
    %v476 = vpop.trf.xlu0
    %v477 = vpop.trf.xlu0
    %v478 = vpop.trf.xlu0
    %v479 = vpop.trf.xlu0
    %v480 = vpop.trf.xlu0
    %v481 = vpop.trf.xlu0
    %v482 = vpop.trf.xlu0
    %v483 = vpop.trf.xlu0
    %484 = vxpose.xlu0.b32.start [1/16] %v296, 128
    %485 = vxpose.xlu0.b32.cont [2/16] %v301, 128
    %486 = vxpose.xlu0.b32.cont [3/16] 0.0, 128
    %487 = vxpose.xlu0.b32.cont [4/16] 0.0, 128
    %488 = vxpose.xlu0.b32.cont [5/16] 0.0, 128
    %489 = vxpose.xlu0.b32.cont [6/16] 0.0, 128
    %490 = vxpose.xlu0.b32.cont [7/16] 0.0, 128
    %491 = vxpose.xlu0.b32.cont [8/16] 0.0, 128
    %492 = vxpose.xlu0.b32.cont [9/16] 0.0, 128
    %493 = vxpose.xlu0.b32.cont [10/16] 0.0, 128
    %494 = vxpose.xlu0.b32.cont [11/16] 0.0, 128
    %495 = vxpose.xlu0.b32.cont [12/16] 0.0, 128
    %496 = vxpose.xlu0.b32.cont [13/16] 0.0, 128
    %497 = vxpose.xlu0.b32.cont [14/16] 0.0, 128
    %498 = vxpose.xlu0.b32.cont [15/16] 0.0, 128
    %499 = vxpose.xlu0.b32.end [16/16] 0.0, 128
    %v500 = vpop.trf.xlu0
    %v501 = vpop.trf.xlu0
    %v502 = vpop.trf.xlu0
    %v503 = vpop.trf.xlu0
    %v504 = vpop.trf.xlu0
    %v505 = vpop.trf.xlu0
    %v506 = vpop.trf.xlu0
    %v507 = vpop.trf.xlu0
    %v508 = vpop.trf.xlu0
    %v509 = vpop.trf.xlu0
    %v510 = vpop.trf.xlu0
    %v511 = vpop.trf.xlu0
    %v512 = vpop.trf.xlu0
    %v513 = vpop.trf.xlu0
    %v514 = vpop.trf.xlu0
    %v515 = vpop.trf.xlu0
    %516 = vxpose.xlu0.b32.start [1/16] %v306, 128
    %517 = vxpose.xlu0.b32.cont [2/16] %v311, 128
    %518 = vxpose.xlu0.b32.cont [3/16] 0.0, 128
    %519 = vxpose.xlu0.b32.cont [4/16] 0.0, 128
    %520 = vxpose.xlu0.b32.cont [5/16] 0.0, 128
    %521 = vxpose.xlu0.b32.cont [6/16] 0.0, 128
    %522 = vxpose.xlu0.b32.cont [7/16] 0.0, 128
    %523 = vxpose.xlu0.b32.cont [8/16] 0.0, 128
    %524 = vxpose.xlu0.b32.cont [9/16] 0.0, 128
    %525 = vxpose.xlu0.b32.cont [10/16] 0.0, 128
    %526 = vxpose.xlu0.b32.cont [11/16] 0.0, 128
    %527 = vxpose.xlu0.b32.cont [12/16] 0.0, 128
    %528 = vxpose.xlu0.b32.cont [13/16] 0.0, 128
    %529 = vxpose.xlu0.b32.cont [14/16] 0.0, 128
    %530 = vxpose.xlu0.b32.cont [15/16] 0.0, 128
    %531 = vxpose.xlu0.b32.end [16/16] 0.0, 128
    %v532 = vpop.trf.xlu0
    %v533 = vpop.trf.xlu0
    %v534 = vpop.trf.xlu0
    %v535 = vpop.trf.xlu0
    %v536 = vpop.trf.xlu0
    %v537 = vpop.trf.xlu0
    %v538 = vpop.trf.xlu0
    %v539 = vpop.trf.xlu0
    %v540 = vpop.trf.xlu0
    %v541 = vpop.trf.xlu0
    %v542 = vpop.trf.xlu0
    %v543 = vpop.trf.xlu0
    %v544 = vpop.trf.xlu0
    %v545 = vpop.trf.xlu0
    %v546 = vpop.trf.xlu0
    %v547 = vpop.trf.xlu0
    %548 = vxpose.xlu0.b32.start [1/16] %v316, 128
    %549 = vxpose.xlu0.b32.cont [2/16] %v321, 128
    %550 = vxpose.xlu0.b32.cont [3/16] 0.0, 128
    %551 = vxpose.xlu0.b32.cont [4/16] 0.0, 128
    %552 = vxpose.xlu0.b32.cont [5/16] 0.0, 128
    %553 = vxpose.xlu0.b32.cont [6/16] 0.0, 128
    %554 = vxpose.xlu0.b32.cont [7/16] 0.0, 128
    %555 = vxpose.xlu0.b32.cont [8/16] 0.0, 128
    %556 = vxpose.xlu0.b32.cont [9/16] 0.0, 128
    %557 = vxpose.xlu0.b32.cont [10/16] 0.0, 128
    %558 = vxpose.xlu0.b32.cont [11/16] 0.0, 128
    %559 = vxpose.xlu0.b32.cont [12/16] 0.0, 128
    %560 = vxpose.xlu0.b32.cont [13/16] 0.0, 128
    %561 = vxpose.xlu0.b32.cont [14/16] 0.0, 128
    %562 = vxpose.xlu0.b32.cont [15/16] 0.0, 128
    %563 = vxpose.xlu0.b32.end [16/16] 0.0, 128
    %v564 = vpop.trf.xlu0
    %v565 = vpop.trf.xlu0
    %v566 = vpop.trf.xlu0
    %v567 = vpop.trf.xlu0
    %v568 = vpop.trf.xlu0
    %v569 = vpop.trf.xlu0
    %v570 = vpop.trf.xlu0
    %v571 = vpop.trf.xlu0
    %v572 = vpop.trf.xlu0
    %v573 = vpop.trf.xlu0
    %v574 = vpop.trf.xlu0
    %v575 = vpop.trf.xlu0
    %v576 = vpop.trf.xlu0
    %v577 = vpop.trf.xlu0
    %v578 = vpop.trf.xlu0
    %v579 = vpop.trf.xlu0
    %v581 = vsel %vm130, %v340, 0
    %v584 = vsel %vm130, %v372, 0
    %v587 = vsel %vm130, %v404, 0
    %v590 = vsel %vm130, %v436, 0
    %v593 = vsel %vm130, %v468, 0
    %v596 = vsel %vm130, %v500, 0
    %v599 = vsel %vm130, %v532, 0
    %v602 = vsel %vm130, %v564, 0
    %604 = vmatprep.subr.mxu0 0.0
    %605 = vmatpush1.msra.mxu0 %v128
    %606 = vmatprep.subr.mxu0 0.0
    %607 = vmatpush1.msra.mxu0 %v129
    %608 = vmatprep.subr.mxu0 0.0
    %609 = vmatpush1.msra.mxu0 0.0
    %610 = vmatprep.subr.mxu0 0.0
    %611 = vmatpush1.msra.mxu0 0.0
    %612 = vmatprep.subr.mxu0 0.0
    %613 = vmatpush1.msra.mxu0 0.0
    %614 = vmatprep.subr.mxu0 0.0
    %615 = vmatpush1.msra.mxu0 0.0
    %616 = vmatprep.subr.mxu0 0.0
    %617 = vmatpush1.msra.mxu0 0.0
    %618 = vmatprep.subr.mxu0 0.0
    %619 = vmatpush1.msra.mxu0 0.0
    %620 = vmatprep.subr.mxu0 0.0
    %621 = vmatpush1.msra.mxu0 0.0
    %622 = vmatprep.subr.mxu0 0.0
    %623 = vmatpush1.msra.mxu0 0.0
    %624 = vmatprep.subr.mxu0 0.0
    %625 = vmatpush1.msra.mxu0 0.0
    %626 = vmatprep.subr.mxu0 0.0
    %627 = vmatpush1.msra.mxu0 0.0
    %628 = vmatprep.subr.mxu0 0.0
    %629 = vmatpush1.msra.mxu0 0.0
    %630 = vmatprep.subr.mxu0 0.0
    %631 = vmatpush1.msra.mxu0 0.0
    %632 = vmatprep.subr.mxu0 0.0
    %633 = vmatpush1.msra.mxu0 0.0
    %634 = vmatprep.subr.mxu0 0.0
    %635 = vmatpush1.msra.mxu0 0.0
    %636 = vmatprep.subr.mxu0 0.0
    %637 = vmatpush1.msra.mxu0 0.0
    %638 = vmatprep.subr.mxu0 0.0
    %639 = vmatpush1.msra.mxu0 0.0
    %640 = vmatprep.subr.mxu0 0.0
    %641 = vmatpush1.msra.mxu0 0.0
    %642 = vmatprep.subr.mxu0 0.0
    %643 = vmatpush1.msra.mxu0 0.0
    %644 = vmatprep.subr.mxu0 0.0
    %645 = vmatpush1.msra.mxu0 0.0
    %646 = vmatprep.subr.mxu0 0.0
    %647 = vmatpush1.msra.mxu0 0.0
    %648 = vmatprep.subr.mxu0 0.0
    %649 = vmatpush1.msra.mxu0 0.0
    %650 = vmatprep.subr.mxu0 0.0
    %651 = vmatpush1.msra.mxu0 0.0
    %652 = vmatprep.subr.mxu0 0.0
    %653 = vmatpush1.msra.mxu0 0.0
    %654 = vmatprep.subr.mxu0 0.0
    %655 = vmatpush1.msra.mxu0 0.0
    %656 = vmatprep.subr.mxu0 0.0
    %657 = vmatpush1.msra.mxu0 0.0
    %658 = vmatprep.subr.mxu0 0.0
    %659 = vmatpush1.msra.mxu0 0.0
    %660 = vmatprep.subr.mxu0 0.0
    %661 = vmatpush1.msra.mxu0 0.0
    %662 = vmatprep.subr.mxu0 0.0
    %663 = vmatpush1.msra.mxu0 0.0
    %664 = vmatprep.subr.mxu0 0.0
    %665 = vmatpush1.msra.mxu0 0.0
    %666 = vmatprep.subr.mxu0 0.0
    %667 = vmatpush1.msra.mxu0 0.0
    %668 = vmatprep.mubr.f32.mxu0 0.0
    %669 = vmatmul.mubr.f32.gmra.mrb[0].mxu0 %v581
    %v670 = vpop.f32.mrb[0].mxu0
    %v671 = vadd.f32 0.0, %v670
    %v672 = vpop.f32.mrb[0].mxu0
    %673 = vmatprep.mubr.f32.mxu0 0.0
    %674 = vmatmul.mubr.f32.gmra.mrb[0].mxu0 %v584
    %v675 = vpop.f32.mrb[0].mxu0
    %v676 = vadd.f32 0.0, %v675
    %v677 = vpop.f32.mrb[0].mxu0
    %678 = vmatprep.mubr.f32.mxu0 0.0
    %679 = vmatmul.mubr.f32.gmra.mrb[0].mxu0 %v587
    %v680 = vpop.f32.mrb[0].mxu0
    %v681 = vadd.f32 0.0, %v680
    %v682 = vpop.f32.mrb[0].mxu0
    %683 = vmatprep.mubr.f32.mxu0 0.0
    %684 = vmatmul.mubr.f32.gmra.mrb[0].mxu0 %v590
    %v685 = vpop.f32.mrb[0].mxu0
    %v686 = vadd.f32 0.0, %v685
    %v687 = vpop.f32.mrb[0].mxu0
    %688 = vmatprep.mubr.f32.mxu0 0.0
    %689 = vmatmul.mubr.f32.gmra.mrb[0].mxu0 %v593
    %v690 = vpop.f32.mrb[0].mxu0
    %v691 = vadd.f32 0.0, %v690
    %v692 = vpop.f32.mrb[0].mxu0
    %693 = vmatprep.mubr.f32.mxu0 0.0
    %694 = vmatmul.mubr.f32.gmra.mrb[0].mxu0 %v596
    %v695 = vpop.f32.mrb[0].mxu0
    %v696 = vadd.f32 0.0, %v695
    %v697 = vpop.f32.mrb[0].mxu0
    %698 = vmatprep.mubr.f32.mxu0 0.0
    %699 = vmatmul.mubr.f32.gmra.mrb[0].mxu0 %v599
    %v700 = vpop.f32.mrb[0].mxu0
    %v701 = vadd.f32 0.0, %v700
    %v702 = vpop.f32.mrb[0].mxu0
    %703 = vmatprep.mubr.f32.mxu0 0.0
    %704 = vmatmul.mubr.f32.gmra.mrb[0].mxu0 %v602
    %v705 = vpop.f32.mrb[0].mxu0
    %v706 = vadd.f32 0.0, %v705
    %v707 = vpop.f32.mrb[0].mxu0
    %708 = vdwg.mxu0
    %v709 = vand.u32 2147483647, %v671
    %v710 = vand.u32 2147483647, %v676
    %v711 = vand.u32 2147483647, %v681
    %v712 = vand.u32 2147483647, %v686
    %v713 = vand.u32 2147483647, %v691
    %v714 = vand.u32 2147483647, %v696
    %v715 = vand.u32 2147483647, %v701
    %v716 = vand.u32 2147483647, %v706
    %vm717 = vcmask 64512
    %v718 = vsel %vm717, %v709, 0.0
    %719 = vadd.xlane.f32.xlu0 %v718
    %v720 = vpop.xlane.xlu0 %719
    %v721 = vsel %vm717, %v710, 0.0
    %722 = vadd.xlane.f32.xlu0 %v721
    %v723 = vpop.xlane.xlu0 %722
    %v724 = vsel %vm717, %v711, 0.0
    %725 = vadd.xlane.f32.xlu0 %v724
    %v726 = vpop.xlane.xlu0 %725
    %v727 = vsel %vm717, %v712, 0.0
    %728 = vadd.xlane.f32.xlu0 %v727
    %v729 = vpop.xlane.xlu0 %728
    %v730 = vsel %vm717, %v713, 0.0
    %731 = vadd.xlane.f32.xlu0 %v730
    %v732 = vpop.xlane.xlu0 %731
    %v733 = vsel %vm717, %v714, 0.0
    %734 = vadd.xlane.f32.xlu0 %v733
    %v735 = vpop.xlane.xlu0 %734
    %v736 = vsel %vm717, %v715, 0.0
    %737 = vadd.xlane.f32.xlu0 %v736
    %v738 = vpop.xlane.xlu0 %737
    %v739 = vsel %vm717, %v716, 0.0
    %740 = vadd.xlane.f32.xlu0 %v739
    %v741 = vpop.xlane.xlu0 %740
    %v742 = vadd.f32 %v720, %v723
    %v743 = vadd.f32 %v742, %v726
    %v744 = vadd.f32 %v743, %v729
    %v745 = vadd.f32 %v744, %v732
    %v746 = vadd.f32 %v745, %v735
    %v747 = vadd.f32 %v746, %v738
    %v748 = vadd.f32 %v747, %v741
    %v749 = vrot.slane %v748, 4
    %v750 = vadd.f32 %v748, %v749
    %v751 = vrot.slane %v750, 2
    %v752 = vadd.f32 %v750, %v751
    %v753 = vrot.slane %v752, 1
    %v754 = vadd.f32 %v752, %v753
    %v755 = vadd.f32 %v754, 0.0
    %v756 = vld [vmem:[%s4] sm:$0xff]
    %v757 = vld [vmem:[%s4 + $0x8] sm:$0xff]
    %v758 = vld [vmem:[%s5] sm:$0xff]
    %v759 = vld [vmem:[%s5 + $0x8] sm:$0xff]
    %760 = vmatprep.subr.mxu0 0.0
    %761 = vmatpush1.msra.mxu0 %v756
    %762 = vmatprep.subr.mxu0 0.0
    %763 = vmatpush1.msra.mxu0 %v757
    %764 = vmatprep.subr.mxu0 0.0
    %765 = vmatpush1.msra.mxu0 0.0
    %766 = vmatprep.subr.mxu0 0.0
    %767 = vmatpush1.msra.mxu0 0.0
    %768 = vmatprep.subr.mxu0 0.0
    %769 = vmatpush1.msra.mxu0 0.0
    %770 = vmatprep.subr.mxu0 0.0
    %771 = vmatpush1.msra.mxu0 0.0
    %772 = vmatprep.subr.mxu0 0.0
    %773 = vmatpush1.msra.mxu0 0.0
    %774 = vmatprep.subr.mxu0 0.0
    %775 = vmatpush1.msra.mxu0 0.0
    %776 = vmatprep.subr.mxu0 0.0
    %777 = vmatpush1.msra.mxu0 0.0
    %778 = vmatprep.subr.mxu0 0.0
    %779 = vmatpush1.msra.mxu0 0.0
    %780 = vmatprep.subr.mxu0 0.0
    %781 = vmatpush1.msra.mxu0 0.0
    %782 = vmatprep.subr.mxu0 0.0
    %783 = vmatpush1.msra.mxu0 0.0
    %784 = vmatprep.subr.mxu0 0.0
    %785 = vmatpush1.msra.mxu0 0.0
    %786 = vmatprep.subr.mxu0 0.0
    %787 = vmatpush1.msra.mxu0 0.0
    %788 = vmatprep.subr.mxu0 0.0
    %789 = vmatpush1.msra.mxu0 0.0
    %790 = vmatprep.subr.mxu0 0.0
    %791 = vmatpush1.msra.mxu0 0.0
    %792 = vmatprep.subr.mxu0 0.0
    %793 = vmatpush1.msra.mxu0 0.0
    %794 = vmatprep.subr.mxu0 0.0
    %795 = vmatpush1.msra.mxu0 0.0
    %796 = vmatprep.subr.mxu0 0.0
    %797 = vmatpush1.msra.mxu0 0.0
    %798 = vmatprep.subr.mxu0 0.0
    %799 = vmatpush1.msra.mxu0 0.0
    %800 = vmatprep.subr.mxu0 0.0
    %801 = vmatpush1.msra.mxu0 0.0
    %802 = vmatprep.subr.mxu0 0.0
    %803 = vmatpush1.msra.mxu0 0.0
    %804 = vmatprep.subr.mxu0 0.0
    %805 = vmatpush1.msra.mxu0 0.0
    %806 = vmatprep.subr.mxu0 0.0
    %807 = vmatpush1.msra.mxu0 0.0
    %808 = vmatprep.subr.mxu0 0.0
    %809 = vmatpush1.msra.mxu0 0.0
    %810 = vmatprep.subr.mxu0 0.0
    %811 = vmatpush1.msra.mxu0 0.0
    %812 = vmatprep.subr.mxu0 0.0
    %813 = vmatpush1.msra.mxu0 0.0
    %814 = vmatprep.subr.mxu0 0.0
    %815 = vmatpush1.msra.mxu0 0.0
    %816 = vmatprep.subr.mxu0 0.0
    %817 = vmatpush1.msra.mxu0 0.0
    %818 = vmatprep.subr.mxu0 0.0
    %819 = vmatpush1.msra.mxu0 0.0
    %820 = vmatprep.subr.mxu0 0.0
    %821 = vmatpush1.msra.mxu0 0.0
    %822 = vmatprep.subr.mxu0 0.0
    %823 = vmatpush1.msra.mxu0 0.0
    %824 = vmatprep.mubr.f32.mxu0 0.0
    %825 = vmatmul.mubr.f32.gmra.mrb[0].mxu0 %v132
    %v826 = vpop.f32.mrb[0].mxu0
    %v827 = vadd.f32 0.0, %v826
    %v828 = vpop.f32.mrb[0].mxu0
    %829 = vmatprep.mubr.f32.mxu0 0.0
    %830 = vmatmul.mubr.f32.gmra.mrb[0].mxu0 %v135
    %v831 = vpop.f32.mrb[0].mxu0
    %v832 = vadd.f32 0.0, %v831
    %v833 = vpop.f32.mrb[0].mxu0
    %834 = vmatprep.mubr.f32.mxu0 0.0
    %835 = vmatmul.mubr.f32.gmra.mrb[0].mxu0 %v138
    %v836 = vpop.f32.mrb[0].mxu0
    %v837 = vadd.f32 0.0, %v836
    %v838 = vpop.f32.mrb[0].mxu0
    %839 = vmatprep.mubr.f32.mxu0 0.0
    %840 = vmatmul.mubr.f32.gmra.mrb[0].mxu0 %v141
    %v841 = vpop.f32.mrb[0].mxu0
    %v842 = vadd.f32 0.0, %v841
    %v843 = vpop.f32.mrb[0].mxu0
    %844 = vmatprep.mubr.f32.mxu0 0.0
    %845 = vmatmul.mubr.f32.gmra.mrb[0].mxu0 %v144
    %v846 = vpop.f32.mrb[0].mxu0
    %v847 = vadd.f32 0.0, %v846
    %v848 = vpop.f32.mrb[0].mxu0
    %849 = vmatprep.mubr.f32.mxu0 0.0
    %850 = vmatmul.mubr.f32.gmra.mrb[0].mxu0 %v147
    %v851 = vpop.f32.mrb[0].mxu0
    %v852 = vadd.f32 0.0, %v851
    %v853 = vpop.f32.mrb[0].mxu0
    %854 = vmatprep.mubr.f32.mxu0 0.0
    %855 = vmatmul.mubr.f32.gmra.mrb[0].mxu0 %v150
    %v856 = vpop.f32.mrb[0].mxu0
    %v857 = vadd.f32 0.0, %v856
    %v858 = vpop.f32.mrb[0].mxu0
    %859 = vmatprep.mubr.f32.mxu0 0.0
    %860 = vmatmul.mubr.f32.gmra.mrb[0].mxu0 %v153
    %v861 = vpop.f32.mrb[0].mxu0
    %v862 = vadd.f32 0.0, %v861
    %v863 = vpop.f32.mrb[0].mxu0
    %864 = vmatprep.mubr.f32.mxu0 0.0
    %865 = vmatmul.mubr.f32.gmra.mrb[0].mxu0 %v156
    %v866 = vpop.f32.mrb[0].mxu0
    %v867 = vadd.f32 0.0, %v866
    %v868 = vpop.f32.mrb[0].mxu0
    %869 = vmatprep.mubr.f32.mxu0 0.0
    %870 = vmatmul.mubr.f32.gmra.mrb[0].mxu0 %v159
    %v871 = vpop.f32.mrb[0].mxu0
    %v872 = vadd.f32 0.0, %v871
    %v873 = vpop.f32.mrb[0].mxu0
    %874 = vmatprep.mubr.f32.mxu0 0.0
    %875 = vmatmul.mubr.f32.gmra.mrb[0].mxu0 %v162
    %v876 = vpop.f32.mrb[0].mxu0
    %v877 = vadd.f32 0.0, %v876
    %v878 = vpop.f32.mrb[0].mxu0
    %879 = vmatprep.mubr.f32.mxu0 0.0
    %880 = vmatmul.mubr.f32.gmra.mrb[0].mxu0 %v165
    %v881 = vpop.f32.mrb[0].mxu0
    %v882 = vadd.f32 0.0, %v881
    %v883 = vpop.f32.mrb[0].mxu0
    %884 = vmatprep.mubr.f32.mxu0 0.0
    %885 = vmatmul.mubr.f32.gmra.mrb[0].mxu0 %v168
    %v886 = vpop.f32.mrb[0].mxu0
    %v887 = vadd.f32 0.0, %v886
    %v888 = vpop.f32.mrb[0].mxu0
    %889 = vmatprep.mubr.f32.mxu0 0.0
    %890 = vmatmul.mubr.f32.gmra.mrb[0].mxu0 %v171
    %v891 = vpop.f32.mrb[0].mxu0
    %v892 = vadd.f32 0.0, %v891
    %v893 = vpop.f32.mrb[0].mxu0
    %894 = vmatprep.mubr.f32.mxu0 0.0
    %895 = vmatmul.mubr.f32.gmra.mrb[0].mxu0 %v174
    %v896 = vpop.f32.mrb[0].mxu0
    %v897 = vadd.f32 0.0, %v896
    %v898 = vpop.f32.mrb[0].mxu0
    %899 = vmatprep.mubr.f32.mxu0 0.0
    %900 = vmatmul.mubr.f32.gmra.mrb[0].mxu0 %v177
    %v901 = vpop.f32.mrb[0].mxu0
    %v902 = vadd.f32 0.0, %v901
    %v903 = vpop.f32.mrb[0].mxu0
    %904 = vdwg.mxu0
    %905 = vxpose.xlu0.b32.start [1/16] %v827, 128
    %906 = vxpose.xlu0.b32.cont [2/16] %v832, 128
    %907 = vxpose.xlu0.b32.cont [3/16] 0.0, 128
    %908 = vxpose.xlu0.b32.cont [4/16] 0.0, 128
    %909 = vxpose.xlu0.b32.cont [5/16] 0.0, 128
    %910 = vxpose.xlu0.b32.cont [6/16] 0.0, 128
    %911 = vxpose.xlu0.b32.cont [7/16] 0.0, 128
    %912 = vxpose.xlu0.b32.cont [8/16] 0.0, 128
    %913 = vxpose.xlu0.b32.cont [9/16] 0.0, 128
    %914 = vxpose.xlu0.b32.cont [10/16] 0.0, 128
    %915 = vxpose.xlu0.b32.cont [11/16] 0.0, 128
    %916 = vxpose.xlu0.b32.cont [12/16] 0.0, 128
    %917 = vxpose.xlu0.b32.cont [13/16] 0.0, 128
    %918 = vxpose.xlu0.b32.cont [14/16] 0.0, 128
    %919 = vxpose.xlu0.b32.cont [15/16] 0.0, 128
    %920 = vxpose.xlu0.b32.end [16/16] 0.0, 128
    %v921 = vpop.trf.xlu0
    %v922 = vpop.trf.xlu0
    %v923 = vpop.trf.xlu0
    %v924 = vpop.trf.xlu0
    %v925 = vpop.trf.xlu0
    %v926 = vpop.trf.xlu0
    %v927 = vpop.trf.xlu0
    %v928 = vpop.trf.xlu0
    %v929 = vpop.trf.xlu0
    %v930 = vpop.trf.xlu0
    %v931 = vpop.trf.xlu0
    %v932 = vpop.trf.xlu0
    %v933 = vpop.trf.xlu0
    %v934 = vpop.trf.xlu0
    %v935 = vpop.trf.xlu0
    %v936 = vpop.trf.xlu0
    %937 = vxpose.xlu0.b32.start [1/16] %v837, 128
    %938 = vxpose.xlu0.b32.cont [2/16] %v842, 128
    %939 = vxpose.xlu0.b32.cont [3/16] 0.0, 128
    %940 = vxpose.xlu0.b32.cont [4/16] 0.0, 128
    %941 = vxpose.xlu0.b32.cont [5/16] 0.0, 128
    %942 = vxpose.xlu0.b32.cont [6/16] 0.0, 128
    %943 = vxpose.xlu0.b32.cont [7/16] 0.0, 128
    %944 = vxpose.xlu0.b32.cont [8/16] 0.0, 128
    %945 = vxpose.xlu0.b32.cont [9/16] 0.0, 128
    %946 = vxpose.xlu0.b32.cont [10/16] 0.0, 128
    %947 = vxpose.xlu0.b32.cont [11/16] 0.0, 128
    %948 = vxpose.xlu0.b32.cont [12/16] 0.0, 128
    %949 = vxpose.xlu0.b32.cont [13/16] 0.0, 128
    %950 = vxpose.xlu0.b32.cont [14/16] 0.0, 128
    %951 = vxpose.xlu0.b32.cont [15/16] 0.0, 128
    %952 = vxpose.xlu0.b32.end [16/16] 0.0, 128
    %v953 = vpop.trf.xlu0
    %v954 = vpop.trf.xlu0
    %v955 = vpop.trf.xlu0
    %v956 = vpop.trf.xlu0
    %v957 = vpop.trf.xlu0
    %v958 = vpop.trf.xlu0
    %v959 = vpop.trf.xlu0
    %v960 = vpop.trf.xlu0
    %v961 = vpop.trf.xlu0
    %v962 = vpop.trf.xlu0
    %v963 = vpop.trf.xlu0
    %v964 = vpop.trf.xlu0
    %v965 = vpop.trf.xlu0
    %v966 = vpop.trf.xlu0
    %v967 = vpop.trf.xlu0
    %v968 = vpop.trf.xlu0
    %969 = vxpose.xlu0.b32.start [1/16] %v847, 128
    %970 = vxpose.xlu0.b32.cont [2/16] %v852, 128
    %971 = vxpose.xlu0.b32.cont [3/16] 0.0, 128
    %972 = vxpose.xlu0.b32.cont [4/16] 0.0, 128
    %973 = vxpose.xlu0.b32.cont [5/16] 0.0, 128
    %974 = vxpose.xlu0.b32.cont [6/16] 0.0, 128
    %975 = vxpose.xlu0.b32.cont [7/16] 0.0, 128
    %976 = vxpose.xlu0.b32.cont [8/16] 0.0, 128
    %977 = vxpose.xlu0.b32.cont [9/16] 0.0, 128
    %978 = vxpose.xlu0.b32.cont [10/16] 0.0, 128
    %979 = vxpose.xlu0.b32.cont [11/16] 0.0, 128
    %980 = vxpose.xlu0.b32.cont [12/16] 0.0, 128
    %981 = vxpose.xlu0.b32.cont [13/16] 0.0, 128
    %982 = vxpose.xlu0.b32.cont [14/16] 0.0, 128
    %983 = vxpose.xlu0.b32.cont [15/16] 0.0, 128
    %984 = vxpose.xlu0.b32.end [16/16] 0.0, 128
    %v985 = vpop.trf.xlu0
    %v986 = vpop.trf.xlu0
    %v987 = vpop.trf.xlu0
    %v988 = vpop.trf.xlu0
    %v989 = vpop.trf.xlu0
    %v990 = vpop.trf.xlu0
    %v991 = vpop.trf.xlu0
    %v992 = vpop.trf.xlu0
    %v993 = vpop.trf.xlu0
    %v994 = vpop.trf.xlu0
    %v995 = vpop.trf.xlu0
    %v996 = vpop.trf.xlu0
    %v997 = vpop.trf.xlu0
    %v998 = vpop.trf.xlu0
    %v999 = vpop.trf.xlu0
    %v1000 = vpop.trf.xlu0
    %1001 = vxpose.xlu0.b32.start [1/16] %v857, 128
    %1002 = vxpose.xlu0.b32.cont [2/16] %v862, 128
    %1003 = vxpose.xlu0.b32.cont [3/16] 0.0, 128
    %1004 = vxpose.xlu0.b32.cont [4/16] 0.0, 128
    %1005 = vxpose.xlu0.b32.cont [5/16] 0.0, 128
    %1006 = vxpose.xlu0.b32.cont [6/16] 0.0, 128
    %1007 = vxpose.xlu0.b32.cont [7/16] 0.0, 128
    %1008 = vxpose.xlu0.b32.cont [8/16] 0.0, 128
    %1009 = vxpose.xlu0.b32.cont [9/16] 0.0, 128
    %1010 = vxpose.xlu0.b32.cont [10/16] 0.0, 128
    %1011 = vxpose.xlu0.b32.cont [11/16] 0.0, 128
    %1012 = vxpose.xlu0.b32.cont [12/16] 0.0, 128
    %1013 = vxpose.xlu0.b32.cont [13/16] 0.0, 128
    %1014 = vxpose.xlu0.b32.cont [14/16] 0.0, 128
    %1015 = vxpose.xlu0.b32.cont [15/16] 0.0, 128
    %1016 = vxpose.xlu0.b32.end [16/16] 0.0, 128
    %v1017 = vpop.trf.xlu0
    %v1018 = vpop.trf.xlu0
    %v1019 = vpop.trf.xlu0
    %v1020 = vpop.trf.xlu0
    %v1021 = vpop.trf.xlu0
    %v1022 = vpop.trf.xlu0
    %v1023 = vpop.trf.xlu0
    %v1024 = vpop.trf.xlu0
    %v1025 = vpop.trf.xlu0
    %v1026 = vpop.trf.xlu0
    %v1027 = vpop.trf.xlu0
    %v1028 = vpop.trf.xlu0
    %v1029 = vpop.trf.xlu0
    %v1030 = vpop.trf.xlu0
    %v1031 = vpop.trf.xlu0
    %v1032 = vpop.trf.xlu0
    %1033 = vxpose.xlu0.b32.start [1/16] %v867, 128
    %1034 = vxpose.xlu0.b32.cont [2/16] %v872, 128
    %1035 = vxpose.xlu0.b32.cont [3/16] 0.0, 128
    %1036 = vxpose.xlu0.b32.cont [4/16] 0.0, 128
    %1037 = vxpose.xlu0.b32.cont [5/16] 0.0, 128
    %1038 = vxpose.xlu0.b32.cont [6/16] 0.0, 128
    %1039 = vxpose.xlu0.b32.cont [7/16] 0.0, 128
    %1040 = vxpose.xlu0.b32.cont [8/16] 0.0, 128
    %1041 = vxpose.xlu0.b32.cont [9/16] 0.0, 128
    %1042 = vxpose.xlu0.b32.cont [10/16] 0.0, 128
    %1043 = vxpose.xlu0.b32.cont [11/16] 0.0, 128
    %1044 = vxpose.xlu0.b32.cont [12/16] 0.0, 128
    %1045 = vxpose.xlu0.b32.cont [13/16] 0.0, 128
    %1046 = vxpose.xlu0.b32.cont [14/16] 0.0, 128
    %1047 = vxpose.xlu0.b32.cont [15/16] 0.0, 128
    %1048 = vxpose.xlu0.b32.end [16/16] 0.0, 128
    %v1049 = vpop.trf.xlu0
    %v1050 = vpop.trf.xlu0
    %v1051 = vpop.trf.xlu0
    %v1052 = vpop.trf.xlu0
    %v1053 = vpop.trf.xlu0
    %v1054 = vpop.trf.xlu0
    %v1055 = vpop.trf.xlu0
    %v1056 = vpop.trf.xlu0
    %v1057 = vpop.trf.xlu0
    %v1058 = vpop.trf.xlu0
    %v1059 = vpop.trf.xlu0
    %v1060 = vpop.trf.xlu0
    %v1061 = vpop.trf.xlu0
    %v1062 = vpop.trf.xlu0
    %v1063 = vpop.trf.xlu0
    %v1064 = vpop.trf.xlu0
    %1065 = vxpose.xlu0.b32.start [1/16] %v877, 128
    %1066 = vxpose.xlu0.b32.cont [2/16] %v882, 128
    %1067 = vxpose.xlu0.b32.cont [3/16] 0.0, 128
    %1068 = vxpose.xlu0.b32.cont [4/16] 0.0, 128
    %1069 = vxpose.xlu0.b32.cont [5/16] 0.0, 128
    %1070 = vxpose.xlu0.b32.cont [6/16] 0.0, 128
    %1071 = vxpose.xlu0.b32.cont [7/16] 0.0, 128
    %1072 = vxpose.xlu0.b32.cont [8/16] 0.0, 128
    %1073 = vxpose.xlu0.b32.cont [9/16] 0.0, 128
    %1074 = vxpose.xlu0.b32.cont [10/16] 0.0, 128
    %1075 = vxpose.xlu0.b32.cont [11/16] 0.0, 128
    %1076 = vxpose.xlu0.b32.cont [12/16] 0.0, 128
    %1077 = vxpose.xlu0.b32.cont [13/16] 0.0, 128
    %1078 = vxpose.xlu0.b32.cont [14/16] 0.0, 128
    %1079 = vxpose.xlu0.b32.cont [15/16] 0.0, 128
    %1080 = vxpose.xlu0.b32.end [16/16] 0.0, 128
    %v1081 = vpop.trf.xlu0
    %v1082 = vpop.trf.xlu0
    %v1083 = vpop.trf.xlu0
    %v1084 = vpop.trf.xlu0
    %v1085 = vpop.trf.xlu0
    %v1086 = vpop.trf.xlu0
    %v1087 = vpop.trf.xlu0
    %v1088 = vpop.trf.xlu0
    %v1089 = vpop.trf.xlu0
    %v1090 = vpop.trf.xlu0
    %v1091 = vpop.trf.xlu0
    %v1092 = vpop.trf.xlu0
    %v1093 = vpop.trf.xlu0
    %v1094 = vpop.trf.xlu0
    %v1095 = vpop.trf.xlu0
    %v1096 = vpop.trf.xlu0
    %1097 = vxpose.xlu0.b32.start [1/16] %v887, 128
    %1098 = vxpose.xlu0.b32.cont [2/16] %v892, 128
    %1099 = vxpose.xlu0.b32.cont [3/16] 0.0, 128
    %1100 = vxpose.xlu0.b32.cont [4/16] 0.0, 128
    %1101 = vxpose.xlu0.b32.cont [5/16] 0.0, 128
    %1102 = vxpose.xlu0.b32.cont [6/16] 0.0, 128
    %1103 = vxpose.xlu0.b32.cont [7/16] 0.0, 128
    %1104 = vxpose.xlu0.b32.cont [8/16] 0.0, 128
    %1105 = vxpose.xlu0.b32.cont [9/16] 0.0, 128
    %1106 = vxpose.xlu0.b32.cont [10/16] 0.0, 128
    %1107 = vxpose.xlu0.b32.cont [11/16] 0.0, 128
    %1108 = vxpose.xlu0.b32.cont [12/16] 0.0, 128
    %1109 = vxpose.xlu0.b32.cont [13/16] 0.0, 128
    %1110 = vxpose.xlu0.b32.cont [14/16] 0.0, 128
    %1111 = vxpose.xlu0.b32.cont [15/16] 0.0, 128
    %1112 = vxpose.xlu0.b32.end [16/16] 0.0, 128
    %v1113 = vpop.trf.xlu0
    %v1114 = vpop.trf.xlu0
    %v1115 = vpop.trf.xlu0
    %v1116 = vpop.trf.xlu0
    %v1117 = vpop.trf.xlu0
    %v1118 = vpop.trf.xlu0
    %v1119 = vpop.trf.xlu0
    %v1120 = vpop.trf.xlu0
    %v1121 = vpop.trf.xlu0
    %v1122 = vpop.trf.xlu0
    %v1123 = vpop.trf.xlu0
    %v1124 = vpop.trf.xlu0
    %v1125 = vpop.trf.xlu0
    %v1126 = vpop.trf.xlu0
    %v1127 = vpop.trf.xlu0
    %v1128 = vpop.trf.xlu0
    %1129 = vxpose.xlu0.b32.start [1/16] %v897, 128
    %1130 = vxpose.xlu0.b32.cont [2/16] %v902, 128
    %1131 = vxpose.xlu0.b32.cont [3/16] 0.0, 128
    %1132 = vxpose.xlu0.b32.cont [4/16] 0.0, 128
    %1133 = vxpose.xlu0.b32.cont [5/16] 0.0, 128
    %1134 = vxpose.xlu0.b32.cont [6/16] 0.0, 128
    %1135 = vxpose.xlu0.b32.cont [7/16] 0.0, 128
    %1136 = vxpose.xlu0.b32.cont [8/16] 0.0, 128
    %1137 = vxpose.xlu0.b32.cont [9/16] 0.0, 128
    %1138 = vxpose.xlu0.b32.cont [10/16] 0.0, 128
    %1139 = vxpose.xlu0.b32.cont [11/16] 0.0, 128
    %1140 = vxpose.xlu0.b32.cont [12/16] 0.0, 128
    %1141 = vxpose.xlu0.b32.cont [13/16] 0.0, 128
    %1142 = vxpose.xlu0.b32.cont [14/16] 0.0, 128
    %1143 = vxpose.xlu0.b32.cont [15/16] 0.0, 128
    %1144 = vxpose.xlu0.b32.end [16/16] 0.0, 128
    %v1145 = vpop.trf.xlu0
    %v1146 = vpop.trf.xlu0
    %v1147 = vpop.trf.xlu0
    %v1148 = vpop.trf.xlu0
    %v1149 = vpop.trf.xlu0
    %v1150 = vpop.trf.xlu0
    %v1151 = vpop.trf.xlu0
    %v1152 = vpop.trf.xlu0
    %v1153 = vpop.trf.xlu0
    %v1154 = vpop.trf.xlu0
    %v1155 = vpop.trf.xlu0
    %v1156 = vpop.trf.xlu0
    %v1157 = vpop.trf.xlu0
    %v1158 = vpop.trf.xlu0
    %v1159 = vpop.trf.xlu0
    %v1160 = vpop.trf.xlu0
    %v1162 = vsel %vm130, %v921, 0
    %v1165 = vsel %vm130, %v922, 0
    %v1168 = vsel %vm130, %v953, 0
    %v1171 = vsel %vm130, %v954, 0
    %v1174 = vsel %vm130, %v985, 0
    %v1177 = vsel %vm130, %v986, 0
    %v1180 = vsel %vm130, %v1017, 0
    %v1183 = vsel %vm130, %v1018, 0
    %v1186 = vsel %vm130, %v1049, 0
    %v1189 = vsel %vm130, %v1050, 0
    %v1192 = vsel %vm130, %v1081, 0
    %v1195 = vsel %vm130, %v1082, 0
    %v1198 = vsel %vm130, %v1113, 0
    %v1201 = vsel %vm130, %v1114, 0
    %v1204 = vsel %vm130, %v1145, 0
    %v1207 = vsel %vm130, %v1146, 0
    %1209 = vmatprep.subr.mxu0 0.0
    %1210 = vmatpush1.msra.mxu0 %v758
    %1211 = vmatprep.subr.mxu0 0.0
    %1212 = vmatpush1.msra.mxu0 %v759
    %1213 = vmatprep.subr.mxu0 0.0
    %1214 = vmatpush1.msra.mxu0 0.0
    %1215 = vmatprep.subr.mxu0 0.0
    %1216 = vmatpush1.msra.mxu0 0.0
    %1217 = vmatprep.subr.mxu0 0.0
    %1218 = vmatpush1.msra.mxu0 0.0
    %1219 = vmatprep.subr.mxu0 0.0
    %1220 = vmatpush1.msra.mxu0 0.0
    %1221 = vmatprep.subr.mxu0 0.0
    %1222 = vmatpush1.msra.mxu0 0.0
    %1223 = vmatprep.subr.mxu0 0.0
    %1224 = vmatpush1.msra.mxu0 0.0
    %1225 = vmatprep.subr.mxu0 0.0
    %1226 = vmatpush1.msra.mxu0 0.0
    %1227 = vmatprep.subr.mxu0 0.0
    %1228 = vmatpush1.msra.mxu0 0.0
    %1229 = vmatprep.subr.mxu0 0.0
    %1230 = vmatpush1.msra.mxu0 0.0
    %1231 = vmatprep.subr.mxu0 0.0
    %1232 = vmatpush1.msra.mxu0 0.0
    %1233 = vmatprep.subr.mxu0 0.0
    %1234 = vmatpush1.msra.mxu0 0.0
    %1235 = vmatprep.subr.mxu0 0.0
    %1236 = vmatpush1.msra.mxu0 0.0
    %1237 = vmatprep.subr.mxu0 0.0
    %1238 = vmatpush1.msra.mxu0 0.0
    %1239 = vmatprep.subr.mxu0 0.0
    %1240 = vmatpush1.msra.mxu0 0.0
    %1241 = vmatprep.subr.mxu0 0.0
    %1242 = vmatpush1.msra.mxu0 0.0
    %1243 = vmatprep.subr.mxu0 0.0
    %1244 = vmatpush1.msra.mxu0 0.0
    %1245 = vmatprep.subr.mxu0 0.0
    %1246 = vmatpush1.msra.mxu0 0.0
    %1247 = vmatprep.subr.mxu0 0.0
    %1248 = vmatpush1.msra.mxu0 0.0
    %1249 = vmatprep.subr.mxu0 0.0
    %1250 = vmatpush1.msra.mxu0 0.0
    %1251 = vmatprep.subr.mxu0 0.0
    %1252 = vmatpush1.msra.mxu0 0.0
    %1253 = vmatprep.subr.mxu0 0.0
    %1254 = vmatpush1.msra.mxu0 0.0
    %1255 = vmatprep.subr.mxu0 0.0
    %1256 = vmatpush1.msra.mxu0 0.0
    %1257 = vmatprep.subr.mxu0 0.0
    %1258 = vmatpush1.msra.mxu0 0.0
    %1259 = vmatprep.subr.mxu0 0.0
    %1260 = vmatpush1.msra.mxu0 0.0
    %1261 = vmatprep.subr.mxu0 0.0
    %1262 = vmatpush1.msra.mxu0 0.0
    %1263 = vmatprep.subr.mxu0 0.0
    %1264 = vmatpush1.msra.mxu0 0.0
    %1265 = vmatprep.subr.mxu0 0.0
    %1266 = vmatpush1.msra.mxu0 0.0
    %1267 = vmatprep.subr.mxu0 0.0
    %1268 = vmatpush1.msra.mxu0 0.0
    %1269 = vmatprep.subr.mxu0 0.0
    %1270 = vmatpush1.msra.mxu0 0.0
    %1271 = vmatprep.subr.mxu0 0.0
    %1272 = vmatpush1.msra.mxu0 0.0
    %1273 = vmatprep.mubr.f32.mxu0 0.0
    %1274 = vmatmul.mubr.f32.gmra.mrb[0].mxu0 %v1162
    %v1275 = vpop.f32.mrb[0].mxu0
    %v1276 = vadd.f32 0.0, %v1275
    %v1277 = vpop.f32.mrb[0].mxu0
    %1278 = vmatprep.mubr.f32.mxu0 0.0
    %1279 = vmatmul.mubr.f32.gmra.mrb[0].mxu0 %v1165
    %v1280 = vpop.f32.mrb[0].mxu0
    %v1281 = vadd.f32 0.0, %v1280
    %v1282 = vpop.f32.mrb[0].mxu0
    %1283 = vmatprep.mubr.f32.mxu0 0.0
    %1284 = vmatmul.mubr.f32.gmra.mrb[0].mxu0 %v1168
    %v1285 = vpop.f32.mrb[0].mxu0
    %v1286 = vadd.f32 0.0, %v1285
    %v1287 = vpop.f32.mrb[0].mxu0
    %1288 = vmatprep.mubr.f32.mxu0 0.0
    %1289 = vmatmul.mubr.f32.gmra.mrb[0].mxu0 %v1171
    %v1290 = vpop.f32.mrb[0].mxu0
    %v1291 = vadd.f32 0.0, %v1290
    %v1292 = vpop.f32.mrb[0].mxu0
    %1293 = vmatprep.mubr.f32.mxu0 0.0
    %1294 = vmatmul.mubr.f32.gmra.mrb[0].mxu0 %v1174
    %v1295 = vpop.f32.mrb[0].mxu0
    %v1296 = vadd.f32 0.0, %v1295
    %v1297 = vpop.f32.mrb[0].mxu0
    %1298 = vmatprep.mubr.f32.mxu0 0.0
    %1299 = vmatmul.mubr.f32.gmra.mrb[0].mxu0 %v1177
    %v1300 = vpop.f32.mrb[0].mxu0
    %v1301 = vadd.f32 0.0, %v1300
    %v1302 = vpop.f32.mrb[0].mxu0
    %1303 = vmatprep.mubr.f32.mxu0 0.0
    %1304 = vmatmul.mubr.f32.gmra.mrb[0].mxu0 %v1180
    %v1305 = vpop.f32.mrb[0].mxu0
    %v1306 = vadd.f32 0.0, %v1305
    %v1307 = vpop.f32.mrb[0].mxu0
    %1308 = vmatprep.mubr.f32.mxu0 0.0
    %1309 = vmatmul.mubr.f32.gmra.mrb[0].mxu0 %v1183
    %v1310 = vpop.f32.mrb[0].mxu0
    %v1311 = vadd.f32 0.0, %v1310
    %v1312 = vpop.f32.mrb[0].mxu0
    %1313 = vmatprep.mubr.f32.mxu0 0.0
    %1314 = vmatmul.mubr.f32.gmra.mrb[0].mxu0 %v1186
    %v1315 = vpop.f32.mrb[0].mxu0
    %v1316 = vadd.f32 0.0, %v1315
    %v1317 = vpop.f32.mrb[0].mxu0
    %1318 = vmatprep.mubr.f32.mxu0 0.0
    %1319 = vmatmul.mubr.f32.gmra.mrb[0].mxu0 %v1189
    %v1320 = vpop.f32.mrb[0].mxu0
    %v1321 = vadd.f32 0.0, %v1320
    %v1322 = vpop.f32.mrb[0].mxu0
    %1323 = vmatprep.mubr.f32.mxu0 0.0
    %1324 = vmatmul.mubr.f32.gmra.mrb[0].mxu0 %v1192
    %v1325 = vpop.f32.mrb[0].mxu0
    %v1326 = vadd.f32 0.0, %v1325
    %v1327 = vpop.f32.mrb[0].mxu0
    %1328 = vmatprep.mubr.f32.mxu0 0.0
    %1329 = vmatmul.mubr.f32.gmra.mrb[0].mxu0 %v1195
    %v1330 = vpop.f32.mrb[0].mxu0
    %v1331 = vadd.f32 0.0, %v1330
    %v1332 = vpop.f32.mrb[0].mxu0
    %1333 = vmatprep.mubr.f32.mxu0 0.0
    %1334 = vmatmul.mubr.f32.gmra.mrb[0].mxu0 %v1198
    %v1335 = vpop.f32.mrb[0].mxu0
    %v1336 = vadd.f32 0.0, %v1335
    %v1337 = vpop.f32.mrb[0].mxu0
    %1338 = vmatprep.mubr.f32.mxu0 0.0
    %1339 = vmatmul.mubr.f32.gmra.mrb[0].mxu0 %v1201
    %v1340 = vpop.f32.mrb[0].mxu0
    %v1341 = vadd.f32 0.0, %v1340
    %v1342 = vpop.f32.mrb[0].mxu0
    %1343 = vmatprep.mubr.f32.mxu0 0.0
    %1344 = vmatmul.mubr.f32.gmra.mrb[0].mxu0 %v1204
    %v1345 = vpop.f32.mrb[0].mxu0
    %v1346 = vadd.f32 0.0, %v1345
    %v1347 = vpop.f32.mrb[0].mxu0
    %1348 = vmatprep.mubr.f32.mxu0 0.0
    %1349 = vmatmul.mubr.f32.gmra.mrb[0].mxu0 %v1207
    %v1350 = vpop.f32.mrb[0].mxu0
    %v1351 = vadd.f32 0.0, %v1350
    %v1352 = vpop.f32.mrb[0].mxu0
    %1353 = vdwg.mxu0
    %v1354 = vand.u32 2147483647, %v1276
    %v1355 = vand.u32 2147483647, %v1281
    %v1356 = vand.u32 2147483647, %v1286
    %v1357 = vand.u32 2147483647, %v1291
    %v1358 = vand.u32 2147483647, %v1296
    %v1359 = vand.u32 2147483647, %v1301
    %v1360 = vand.u32 2147483647, %v1306
    %v1361 = vand.u32 2147483647, %v1311
    %v1362 = vand.u32 2147483647, %v1316
    %v1363 = vand.u32 2147483647, %v1321
    %v1364 = vand.u32 2147483647, %v1326
    %v1365 = vand.u32 2147483647, %v1331
    %v1366 = vand.u32 2147483647, %v1336
    %v1367 = vand.u32 2147483647, %v1341
    %v1368 = vand.u32 2147483647, %v1346
    %v1369 = vand.u32 2147483647, %v1351
    %v1370 = vsel %vm130, %v1354, 0.0
    %1371 = vadd.xlane.f32.xlu0 %v1370
    %v1372 = vpop.xlane.xlu0 %1371
    %v1373 = vsel %vm130, %v1355, 0.0
    %1374 = vadd.xlane.f32.xlu0 %v1373
    %v1375 = vpop.xlane.xlu0 %1374
    %v1376 = vsel %vm130, %v1356, 0.0
    %1377 = vadd.xlane.f32.xlu0 %v1376
    %v1378 = vpop.xlane.xlu0 %1377
    %v1379 = vsel %vm130, %v1357, 0.0
    %1380 = vadd.xlane.f32.xlu0 %v1379
    %v1381 = vpop.xlane.xlu0 %1380
    %v1382 = vsel %vm130, %v1358, 0.0
    %1383 = vadd.xlane.f32.xlu0 %v1382
    %v1384 = vpop.xlane.xlu0 %1383
    %v1385 = vsel %vm130, %v1359, 0.0
    %1386 = vadd.xlane.f32.xlu0 %v1385
    %v1387 = vpop.xlane.xlu0 %1386
    %v1388 = vsel %vm130, %v1360, 0.0
    %1389 = vadd.xlane.f32.xlu0 %v1388
    %v1390 = vpop.xlane.xlu0 %1389
    %v1391 = vsel %vm130, %v1361, 0.0
    %1392 = vadd.xlane.f32.xlu0 %v1391
    %v1393 = vpop.xlane.xlu0 %1392
    %v1394 = vsel %vm130, %v1362, 0.0
    %1395 = vadd.xlane.f32.xlu0 %v1394
    %v1396 = vpop.xlane.xlu0 %1395
    %v1397 = vsel %vm130, %v1363, 0.0
    %1398 = vadd.xlane.f32.xlu0 %v1397
    %v1399 = vpop.xlane.xlu0 %1398
    %v1400 = vsel %vm130, %v1364, 0.0
    %1401 = vadd.xlane.f32.xlu0 %v1400
    %v1402 = vpop.xlane.xlu0 %1401
    %v1403 = vsel %vm130, %v1365, 0.0
    %1404 = vadd.xlane.f32.xlu0 %v1403
    %v1405 = vpop.xlane.xlu0 %1404
    %v1406 = vsel %vm130, %v1366, 0.0
    %1407 = vadd.xlane.f32.xlu0 %v1406
    %v1408 = vpop.xlane.xlu0 %1407
    %v1409 = vsel %vm130, %v1367, 0.0
    %1410 = vadd.xlane.f32.xlu0 %v1409
    %v1411 = vpop.xlane.xlu0 %1410
    %v1412 = vsel %vm130, %v1368, 0.0
    %1413 = vadd.xlane.f32.xlu0 %v1412
    %v1414 = vpop.xlane.xlu0 %1413
    %v1415 = vsel %vm130, %v1369, 0.0
    %1416 = vadd.xlane.f32.xlu0 %v1415
    %v1417 = vpop.xlane.xlu0 %1416
    %v1418 = vadd.f32 %v1372, %v1375
    %v1419 = vadd.f32 %v1418, %v1378
    %v1420 = vadd.f32 %v1419, %v1381
    %v1421 = vadd.f32 %v1420, %v1384
    %v1422 = vadd.f32 %v1421, %v1387
    %v1423 = vadd.f32 %v1422, %v1390
    %v1424 = vadd.f32 %v1423, %v1393
    %v1425 = vadd.f32 %v1424, %v1396
    %v1426 = vadd.f32 %v1425, %v1399
    %v1427 = vadd.f32 %v1426, %v1402
    %v1428 = vadd.f32 %v1427, %v1405
    %v1429 = vadd.f32 %v1428, %v1408
    %v1430 = vadd.f32 %v1429, %v1411
    %v1431 = vadd.f32 %v1430, %v1414
    %v1432 = vadd.f32 %v1431, %v1417
    %v1433 = vrot.slane %v1432, 4
    %v1434 = vadd.f32 %v1432, %v1433
    %v1435 = vrot.slane %v1434, 2
    %v1436 = vadd.f32 %v1434, %v1435
    %v1437 = vrot.slane %v1436, 1
    %v1438 = vadd.f32 %v1436, %v1437
    %v1439 = vadd.f32 %v755, %v1438
    %v1440 = vld [vmem:[%s6] sm:$0xff]
    %v1441 = vld [vmem:[%s6 + $0x8] sm:$0xff]
    %v1442 = vld [vmem:[%s7] sm:$0xff]
    %v1443 = vld [vmem:[%s7 + $0x8] sm:$0xff]
    %1444 = vmatprep.subr.mxu0 0.0
    %1445 = vmatpush1.msra.mxu0 %v1440
    %1446 = vmatprep.subr.mxu0 0.0
    %1447 = vmatpush1.msra.mxu0 %v1441
    %1448 = vmatprep.subr.mxu0 0.0
    %1449 = vmatpush1.msra.mxu0 0.0
    %1450 = vmatprep.subr.mxu0 0.0
    %1451 = vmatpush1.msra.mxu0 0.0
    %1452 = vmatprep.subr.mxu0 0.0
    %1453 = vmatpush1.msra.mxu0 0.0
    %1454 = vmatprep.subr.mxu0 0.0
    %1455 = vmatpush1.msra.mxu0 0.0
    %1456 = vmatprep.subr.mxu0 0.0
    %1457 = vmatpush1.msra.mxu0 0.0
    %1458 = vmatprep.subr.mxu0 0.0
    %1459 = vmatpush1.msra.mxu0 0.0
    %1460 = vmatprep.subr.mxu0 0.0
    %1461 = vmatpush1.msra.mxu0 0.0
    %1462 = vmatprep.subr.mxu0 0.0
    %1463 = vmatpush1.msra.mxu0 0.0
    %1464 = vmatprep.subr.mxu0 0.0
    %1465 = vmatpush1.msra.mxu0 0.0
    %1466 = vmatprep.subr.mxu0 0.0
    %1467 = vmatpush1.msra.mxu0 0.0
    %1468 = vmatprep.subr.mxu0 0.0
    %1469 = vmatpush1.msra.mxu0 0.0
    %1470 = vmatprep.subr.mxu0 0.0
    %1471 = vmatpush1.msra.mxu0 0.0
    %1472 = vmatprep.subr.mxu0 0.0
    %1473 = vmatpush1.msra.mxu0 0.0
    %1474 = vmatprep.subr.mxu0 0.0
    %1475 = vmatpush1.msra.mxu0 0.0
    %1476 = vmatprep.subr.mxu0 0.0
    %1477 = vmatpush1.msra.mxu0 0.0
    %1478 = vmatprep.subr.mxu0 0.0
    %1479 = vmatpush1.msra.mxu0 0.0
    %1480 = vmatprep.subr.mxu0 0.0
    %1481 = vmatpush1.msra.mxu0 0.0
    %1482 = vmatprep.subr.mxu0 0.0
    %1483 = vmatpush1.msra.mxu0 0.0
    %1484 = vmatprep.subr.mxu0 0.0
    %1485 = vmatpush1.msra.mxu0 0.0
    %1486 = vmatprep.subr.mxu0 0.0
    %1487 = vmatpush1.msra.mxu0 0.0
    %1488 = vmatprep.subr.mxu0 0.0
    %1489 = vmatpush1.msra.mxu0 0.0
    %1490 = vmatprep.subr.mxu0 0.0
    %1491 = vmatpush1.msra.mxu0 0.0
    %1492 = vmatprep.subr.mxu0 0.0
    %1493 = vmatpush1.msra.mxu0 0.0
    %1494 = vmatprep.subr.mxu0 0.0
    %1495 = vmatpush1.msra.mxu0 0.0
    %1496 = vmatprep.subr.mxu0 0.0
    %1497 = vmatpush1.msra.mxu0 0.0
    %1498 = vmatprep.subr.mxu0 0.0
    %1499 = vmatpush1.msra.mxu0 0.0
    %1500 = vmatprep.subr.mxu0 0.0
    %1501 = vmatpush1.msra.mxu0 0.0
    %1502 = vmatprep.subr.mxu0 0.0
    %1503 = vmatpush1.msra.mxu0 0.0
    %1504 = vmatprep.subr.mxu0 0.0
    %1505 = vmatpush1.msra.mxu0 0.0
    %1506 = vmatprep.subr.mxu0 0.0
    %1507 = vmatpush1.msra.mxu0 0.0
    %1508 = vmatprep.mubr.f32.mxu0 0.0
    %1509 = vmatmul.mubr.f32.gmra.mrb[0].mxu0 %v132
    %v1510 = vpop.f32.mrb[0].mxu0
    %v1511 = vadd.f32 0.0, %v1510
    %v1512 = vpop.f32.mrb[0].mxu0
    %1513 = vmatprep.mubr.f32.mxu0 0.0
    %1514 = vmatmul.mubr.f32.gmra.mrb[0].mxu0 %v135
    %v1515 = vpop.f32.mrb[0].mxu0
    %v1516 = vadd.f32 0.0, %v1515
    %v1517 = vpop.f32.mrb[0].mxu0
    %1518 = vmatprep.mubr.f32.mxu0 0.0
    %1519 = vmatmul.mubr.f32.gmra.mrb[0].mxu0 %v138
    %v1520 = vpop.f32.mrb[0].mxu0
    %v1521 = vadd.f32 0.0, %v1520
    %v1522 = vpop.f32.mrb[0].mxu0
    %1523 = vmatprep.mubr.f32.mxu0 0.0
    %1524 = vmatmul.mubr.f32.gmra.mrb[0].mxu0 %v141
    %v1525 = vpop.f32.mrb[0].mxu0
    %v1526 = vadd.f32 0.0, %v1525
    %v1527 = vpop.f32.mrb[0].mxu0
    %1528 = vmatprep.mubr.f32.mxu0 0.0
    %1529 = vmatmul.mubr.f32.gmra.mrb[0].mxu0 %v144
    %v1530 = vpop.f32.mrb[0].mxu0
    %v1531 = vadd.f32 0.0, %v1530
    %v1532 = vpop.f32.mrb[0].mxu0
    %1533 = vmatprep.mubr.f32.mxu0 0.0
    %1534 = vmatmul.mubr.f32.gmra.mrb[0].mxu0 %v147
    %v1535 = vpop.f32.mrb[0].mxu0
    %v1536 = vadd.f32 0.0, %v1535
    %v1537 = vpop.f32.mrb[0].mxu0
    %1538 = vmatprep.mubr.f32.mxu0 0.0
    %1539 = vmatmul.mubr.f32.gmra.mrb[0].mxu0 %v150
    %v1540 = vpop.f32.mrb[0].mxu0
    %v1541 = vadd.f32 0.0, %v1540
    %v1542 = vpop.f32.mrb[0].mxu0
    %1543 = vmatprep.mubr.f32.mxu0 0.0
    %1544 = vmatmul.mubr.f32.gmra.mrb[0].mxu0 %v153
    %v1545 = vpop.f32.mrb[0].mxu0
    %v1546 = vadd.f32 0.0, %v1545
    %v1547 = vpop.f32.mrb[0].mxu0
    %1548 = vmatprep.mubr.f32.mxu0 0.0
    %1549 = vmatmul.mubr.f32.gmra.mrb[0].mxu0 %v156
    %v1550 = vpop.f32.mrb[0].mxu0
    %v1551 = vadd.f32 0.0, %v1550
    %v1552 = vpop.f32.mrb[0].mxu0
    %1553 = vmatprep.mubr.f32.mxu0 0.0
    %1554 = vmatmul.mubr.f32.gmra.mrb[0].mxu0 %v159
    %v1555 = vpop.f32.mrb[0].mxu0
    %v1556 = vadd.f32 0.0, %v1555
    %v1557 = vpop.f32.mrb[0].mxu0
    %1558 = vmatprep.mubr.f32.mxu0 0.0
    %1559 = vmatmul.mubr.f32.gmra.mrb[0].mxu0 %v162
    %v1560 = vpop.f32.mrb[0].mxu0
    %v1561 = vadd.f32 0.0, %v1560
    %v1562 = vpop.f32.mrb[0].mxu0
    %1563 = vmatprep.mubr.f32.mxu0 0.0
    %1564 = vmatmul.mubr.f32.gmra.mrb[0].mxu0 %v165
    %v1565 = vpop.f32.mrb[0].mxu0
    %v1566 = vadd.f32 0.0, %v1565
    %v1567 = vpop.f32.mrb[0].mxu0
    %1568 = vmatprep.mubr.f32.mxu0 0.0
    %1569 = vmatmul.mubr.f32.gmra.mrb[0].mxu0 %v168
    %v1570 = vpop.f32.mrb[0].mxu0
    %v1571 = vadd.f32 0.0, %v1570
    %v1572 = vpop.f32.mrb[0].mxu0
    %1573 = vmatprep.mubr.f32.mxu0 0.0
    %1574 = vmatmul.mubr.f32.gmra.mrb[0].mxu0 %v171
    %v1575 = vpop.f32.mrb[0].mxu0
    %v1576 = vadd.f32 0.0, %v1575
    %v1577 = vpop.f32.mrb[0].mxu0
    %1578 = vmatprep.mubr.f32.mxu0 0.0
    %1579 = vmatmul.mubr.f32.gmra.mrb[0].mxu0 %v174
    %v1580 = vpop.f32.mrb[0].mxu0
    %v1581 = vadd.f32 0.0, %v1580
    %v1582 = vpop.f32.mrb[0].mxu0
    %1583 = vmatprep.mubr.f32.mxu0 0.0
    %1584 = vmatmul.mubr.f32.gmra.mrb[0].mxu0 %v177
    %v1585 = vpop.f32.mrb[0].mxu0
    %v1586 = vadd.f32 0.0, %v1585
    %v1587 = vpop.f32.mrb[0].mxu0
    %1588 = vdwg.mxu0
    %1589 = vxpose.xlu0.b32.start [1/16] %v1511, 128
    %1590 = vxpose.xlu0.b32.cont [2/16] %v1516, 128
    %1591 = vxpose.xlu0.b32.cont [3/16] 0.0, 128
    %1592 = vxpose.xlu0.b32.cont [4/16] 0.0, 128
    %1593 = vxpose.xlu0.b32.cont [5/16] 0.0, 128
    %1594 = vxpose.xlu0.b32.cont [6/16] 0.0, 128
    %1595 = vxpose.xlu0.b32.cont [7/16] 0.0, 128
    %1596 = vxpose.xlu0.b32.cont [8/16] 0.0, 128
    %1597 = vxpose.xlu0.b32.cont [9/16] 0.0, 128
    %1598 = vxpose.xlu0.b32.cont [10/16] 0.0, 128
    %1599 = vxpose.xlu0.b32.cont [11/16] 0.0, 128
    %1600 = vxpose.xlu0.b32.cont [12/16] 0.0, 128
    %1601 = vxpose.xlu0.b32.cont [13/16] 0.0, 128
    %1602 = vxpose.xlu0.b32.cont [14/16] 0.0, 128
    %1603 = vxpose.xlu0.b32.cont [15/16] 0.0, 128
    %1604 = vxpose.xlu0.b32.end [16/16] 0.0, 128
    %v1605 = vpop.trf.xlu0
    %v1606 = vpop.trf.xlu0
    %v1607 = vpop.trf.xlu0
    %v1608 = vpop.trf.xlu0
    %v1609 = vpop.trf.xlu0
    %v1610 = vpop.trf.xlu0
    %v1611 = vpop.trf.xlu0
    %v1612 = vpop.trf.xlu0
    %v1613 = vpop.trf.xlu0
    %v1614 = vpop.trf.xlu0
    %v1615 = vpop.trf.xlu0
    %v1616 = vpop.trf.xlu0
    %v1617 = vpop.trf.xlu0
    %v1618 = vpop.trf.xlu0
    %v1619 = vpop.trf.xlu0
    %v1620 = vpop.trf.xlu0
    %1621 = vxpose.xlu0.b32.start [1/16] %v1521, 128
    %1622 = vxpose.xlu0.b32.cont [2/16] %v1526, 128
    %1623 = vxpose.xlu0.b32.cont [3/16] 0.0, 128
    %1624 = vxpose.xlu0.b32.cont [4/16] 0.0, 128
    %1625 = vxpose.xlu0.b32.cont [5/16] 0.0, 128
    %1626 = vxpose.xlu0.b32.cont [6/16] 0.0, 128
    %1627 = vxpose.xlu0.b32.cont [7/16] 0.0, 128
    %1628 = vxpose.xlu0.b32.cont [8/16] 0.0, 128
    %1629 = vxpose.xlu0.b32.cont [9/16] 0.0, 128
    %1630 = vxpose.xlu0.b32.cont [10/16] 0.0, 128
    %1631 = vxpose.xlu0.b32.cont [11/16] 0.0, 128
    %1632 = vxpose.xlu0.b32.cont [12/16] 0.0, 128
    %1633 = vxpose.xlu0.b32.cont [13/16] 0.0, 128
    %1634 = vxpose.xlu0.b32.cont [14/16] 0.0, 128
    %1635 = vxpose.xlu0.b32.cont [15/16] 0.0, 128
    %1636 = vxpose.xlu0.b32.end [16/16] 0.0, 128
    %v1637 = vpop.trf.xlu0
    %v1638 = vpop.trf.xlu0
    %v1639 = vpop.trf.xlu0
    %v1640 = vpop.trf.xlu0
    %v1641 = vpop.trf.xlu0
    %v1642 = vpop.trf.xlu0
    %v1643 = vpop.trf.xlu0
    %v1644 = vpop.trf.xlu0
    %v1645 = vpop.trf.xlu0
    %v1646 = vpop.trf.xlu0
    %v1647 = vpop.trf.xlu0
    %v1648 = vpop.trf.xlu0
    %v1649 = vpop.trf.xlu0
    %v1650 = vpop.trf.xlu0
    %v1651 = vpop.trf.xlu0
    %v1652 = vpop.trf.xlu0
    %1653 = vxpose.xlu0.b32.start [1/16] %v1531, 128
    %1654 = vxpose.xlu0.b32.cont [2/16] %v1536, 128
    %1655 = vxpose.xlu0.b32.cont [3/16] 0.0, 128
    %1656 = vxpose.xlu0.b32.cont [4/16] 0.0, 128
    %1657 = vxpose.xlu0.b32.cont [5/16] 0.0, 128
    %1658 = vxpose.xlu0.b32.cont [6/16] 0.0, 128
    %1659 = vxpose.xlu0.b32.cont [7/16] 0.0, 128
    %1660 = vxpose.xlu0.b32.cont [8/16] 0.0, 128
    %1661 = vxpose.xlu0.b32.cont [9/16] 0.0, 128
    %1662 = vxpose.xlu0.b32.cont [10/16] 0.0, 128
    %1663 = vxpose.xlu0.b32.cont [11/16] 0.0, 128
    %1664 = vxpose.xlu0.b32.cont [12/16] 0.0, 128
    %1665 = vxpose.xlu0.b32.cont [13/16] 0.0, 128
    %1666 = vxpose.xlu0.b32.cont [14/16] 0.0, 128
    %1667 = vxpose.xlu0.b32.cont [15/16] 0.0, 128
    %1668 = vxpose.xlu0.b32.end [16/16] 0.0, 128
    %v1669 = vpop.trf.xlu0
    %v1670 = vpop.trf.xlu0
    %v1671 = vpop.trf.xlu0
    %v1672 = vpop.trf.xlu0
    %v1673 = vpop.trf.xlu0
    %v1674 = vpop.trf.xlu0
    %v1675 = vpop.trf.xlu0
    %v1676 = vpop.trf.xlu0
    %v1677 = vpop.trf.xlu0
    %v1678 = vpop.trf.xlu0
    %v1679 = vpop.trf.xlu0
    %v1680 = vpop.trf.xlu0
    %v1681 = vpop.trf.xlu0
    %v1682 = vpop.trf.xlu0
    %v1683 = vpop.trf.xlu0
    %v1684 = vpop.trf.xlu0
    %1685 = vxpose.xlu0.b32.start [1/16] %v1541, 128
    %1686 = vxpose.xlu0.b32.cont [2/16] %v1546, 128
    %1687 = vxpose.xlu0.b32.cont [3/16] 0.0, 128
    %1688 = vxpose.xlu0.b32.cont [4/16] 0.0, 128
    %1689 = vxpose.xlu0.b32.cont [5/16] 0.0, 128
    %1690 = vxpose.xlu0.b32.cont [6/16] 0.0, 128
    %1691 = vxpose.xlu0.b32.cont [7/16] 0.0, 128
    %1692 = vxpose.xlu0.b32.cont [8/16] 0.0, 128
    %1693 = vxpose.xlu0.b32.cont [9/16] 0.0, 128
    %1694 = vxpose.xlu0.b32.cont [10/16] 0.0, 128
    %1695 = vxpose.xlu0.b32.cont [11/16] 0.0, 128
    %1696 = vxpose.xlu0.b32.cont [12/16] 0.0, 128
    %1697 = vxpose.xlu0.b32.cont [13/16] 0.0, 128
    %1698 = vxpose.xlu0.b32.cont [14/16] 0.0, 128
    %1699 = vxpose.xlu0.b32.cont [15/16] 0.0, 128
    %1700 = vxpose.xlu0.b32.end [16/16] 0.0, 128
    %v1701 = vpop.trf.xlu0
    %v1702 = vpop.trf.xlu0
    %v1703 = vpop.trf.xlu0
    %v1704 = vpop.trf.xlu0
    %v1705 = vpop.trf.xlu0
    %v1706 = vpop.trf.xlu0
    %v1707 = vpop.trf.xlu0
    %v1708 = vpop.trf.xlu0
    %v1709 = vpop.trf.xlu0
    %v1710 = vpop.trf.xlu0
    %v1711 = vpop.trf.xlu0
    %v1712 = vpop.trf.xlu0
    %v1713 = vpop.trf.xlu0
    %v1714 = vpop.trf.xlu0
    %v1715 = vpop.trf.xlu0
    %v1716 = vpop.trf.xlu0
    %1717 = vxpose.xlu0.b32.start [1/16] %v1551, 128
    %1718 = vxpose.xlu0.b32.cont [2/16] %v1556, 128
    %1719 = vxpose.xlu0.b32.cont [3/16] 0.0, 128
    %1720 = vxpose.xlu0.b32.cont [4/16] 0.0, 128
    %1721 = vxpose.xlu0.b32.cont [5/16] 0.0, 128
    %1722 = vxpose.xlu0.b32.cont [6/16] 0.0, 128
    %1723 = vxpose.xlu0.b32.cont [7/16] 0.0, 128
    %1724 = vxpose.xlu0.b32.cont [8/16] 0.0, 128
    %1725 = vxpose.xlu0.b32.cont [9/16] 0.0, 128
    %1726 = vxpose.xlu0.b32.cont [10/16] 0.0, 128
    %1727 = vxpose.xlu0.b32.cont [11/16] 0.0, 128
    %1728 = vxpose.xlu0.b32.cont [12/16] 0.0, 128
    %1729 = vxpose.xlu0.b32.cont [13/16] 0.0, 128
    %1730 = vxpose.xlu0.b32.cont [14/16] 0.0, 128
    %1731 = vxpose.xlu0.b32.cont [15/16] 0.0, 128
    %1732 = vxpose.xlu0.b32.end [16/16] 0.0, 128
    %v1733 = vpop.trf.xlu0
    %v1734 = vpop.trf.xlu0
    %v1735 = vpop.trf.xlu0
    %v1736 = vpop.trf.xlu0
    %v1737 = vpop.trf.xlu0
    %v1738 = vpop.trf.xlu0
    %v1739 = vpop.trf.xlu0
    %v1740 = vpop.trf.xlu0
    %v1741 = vpop.trf.xlu0
    %v1742 = vpop.trf.xlu0
    %v1743 = vpop.trf.xlu0
    %v1744 = vpop.trf.xlu0
    %v1745 = vpop.trf.xlu0
    %v1746 = vpop.trf.xlu0
    %v1747 = vpop.trf.xlu0
    %v1748 = vpop.trf.xlu0
    %1749 = vxpose.xlu0.b32.start [1/16] %v1561, 128
    %1750 = vxpose.xlu0.b32.cont [2/16] %v1566, 128
    %1751 = vxpose.xlu0.b32.cont [3/16] 0.0, 128
    %1752 = vxpose.xlu0.b32.cont [4/16] 0.0, 128
    %1753 = vxpose.xlu0.b32.cont [5/16] 0.0, 128
    %1754 = vxpose.xlu0.b32.cont [6/16] 0.0, 128
    %1755 = vxpose.xlu0.b32.cont [7/16] 0.0, 128
    %1756 = vxpose.xlu0.b32.cont [8/16] 0.0, 128
    %1757 = vxpose.xlu0.b32.cont [9/16] 0.0, 128
    %1758 = vxpose.xlu0.b32.cont [10/16] 0.0, 128
    %1759 = vxpose.xlu0.b32.cont [11/16] 0.0, 128
    %1760 = vxpose.xlu0.b32.cont [12/16] 0.0, 128
    %1761 = vxpose.xlu0.b32.cont [13/16] 0.0, 128
    %1762 = vxpose.xlu0.b32.cont [14/16] 0.0, 128
    %1763 = vxpose.xlu0.b32.cont [15/16] 0.0, 128
    %1764 = vxpose.xlu0.b32.end [16/16] 0.0, 128
    %v1765 = vpop.trf.xlu0
    %v1766 = vpop.trf.xlu0
    %v1767 = vpop.trf.xlu0
    %v1768 = vpop.trf.xlu0
    %v1769 = vpop.trf.xlu0
    %v1770 = vpop.trf.xlu0
    %v1771 = vpop.trf.xlu0
    %v1772 = vpop.trf.xlu0
    %v1773 = vpop.trf.xlu0
    %v1774 = vpop.trf.xlu0
    %v1775 = vpop.trf.xlu0
    %v1776 = vpop.trf.xlu0
    %v1777 = vpop.trf.xlu0
    %v1778 = vpop.trf.xlu0
    %v1779 = vpop.trf.xlu0
    %v1780 = vpop.trf.xlu0
    %1781 = vxpose.xlu0.b32.start [1/16] %v1571, 128
    %1782 = vxpose.xlu0.b32.cont [2/16] %v1576, 128
    %1783 = vxpose.xlu0.b32.cont [3/16] 0.0, 128
    %1784 = vxpose.xlu0.b32.cont [4/16] 0.0, 128
    %1785 = vxpose.xlu0.b32.cont [5/16] 0.0, 128
    %1786 = vxpose.xlu0.b32.cont [6/16] 0.0, 128
    %1787 = vxpose.xlu0.b32.cont [7/16] 0.0, 128
    %1788 = vxpose.xlu0.b32.cont [8/16] 0.0, 128
    %1789 = vxpose.xlu0.b32.cont [9/16] 0.0, 128
    %1790 = vxpose.xlu0.b32.cont [10/16] 0.0, 128
    %1791 = vxpose.xlu0.b32.cont [11/16] 0.0, 128
    %1792 = vxpose.xlu0.b32.cont [12/16] 0.0, 128
    %1793 = vxpose.xlu0.b32.cont [13/16] 0.0, 128
    %1794 = vxpose.xlu0.b32.cont [14/16] 0.0, 128
    %1795 = vxpose.xlu0.b32.cont [15/16] 0.0, 128
    %1796 = vxpose.xlu0.b32.end [16/16] 0.0, 128
    %v1797 = vpop.trf.xlu0
    %v1798 = vpop.trf.xlu0
    %v1799 = vpop.trf.xlu0
    %v1800 = vpop.trf.xlu0
    %v1801 = vpop.trf.xlu0
    %v1802 = vpop.trf.xlu0
    %v1803 = vpop.trf.xlu0
    %v1804 = vpop.trf.xlu0
    %v1805 = vpop.trf.xlu0
    %v1806 = vpop.trf.xlu0
    %v1807 = vpop.trf.xlu0
    %v1808 = vpop.trf.xlu0
    %v1809 = vpop.trf.xlu0
    %v1810 = vpop.trf.xlu0
    %v1811 = vpop.trf.xlu0
    %v1812 = vpop.trf.xlu0
    %1813 = vxpose.xlu0.b32.start [1/16] %v1581, 128
    %1814 = vxpose.xlu0.b32.cont [2/16] %v1586, 128
    %1815 = vxpose.xlu0.b32.cont [3/16] 0.0, 128
    %1816 = vxpose.xlu0.b32.cont [4/16] 0.0, 128
    %1817 = vxpose.xlu0.b32.cont [5/16] 0.0, 128
    %1818 = vxpose.xlu0.b32.cont [6/16] 0.0, 128
    %1819 = vxpose.xlu0.b32.cont [7/16] 0.0, 128
    %1820 = vxpose.xlu0.b32.cont [8/16] 0.0, 128
    %1821 = vxpose.xlu0.b32.cont [9/16] 0.0, 128
    %1822 = vxpose.xlu0.b32.cont [10/16] 0.0, 128
    %1823 = vxpose.xlu0.b32.cont [11/16] 0.0, 128
    %1824 = vxpose.xlu0.b32.cont [12/16] 0.0, 128
    %1825 = vxpose.xlu0.b32.cont [13/16] 0.0, 128
    %1826 = vxpose.xlu0.b32.cont [14/16] 0.0, 128
    %1827 = vxpose.xlu0.b32.cont [15/16] 0.0, 128
    %1828 = vxpose.xlu0.b32.end [16/16] 0.0, 128
    %v1829 = vpop.trf.xlu0
    %v1830 = vpop.trf.xlu0
    %v1831 = vpop.trf.xlu0
    %v1832 = vpop.trf.xlu0
    %v1833 = vpop.trf.xlu0
    %v1834 = vpop.trf.xlu0
    %v1835 = vpop.trf.xlu0
    %v1836 = vpop.trf.xlu0
    %v1837 = vpop.trf.xlu0
    %v1838 = vpop.trf.xlu0
    %v1839 = vpop.trf.xlu0
    %v1840 = vpop.trf.xlu0
    %v1841 = vpop.trf.xlu0
    %v1842 = vpop.trf.xlu0
    %v1843 = vpop.trf.xlu0
    %v1844 = vpop.trf.xlu0
    %v1846 = vsel %vm130, %v1605, 0
    %v1849 = vsel %vm130, %v1606, 0
    %v1852 = vsel %vm130, %v1607, 0
    %v1855 = vsel %vm130, %v1608, 0
    %v1858 = vsel %vm130, %v1637, 0
    %v1861 = vsel %vm130, %v1638, 0
    %v1864 = vsel %vm130, %v1639, 0
    %v1867 = vsel %vm130, %v1640, 0
    %v1870 = vsel %vm130, %v1669, 0
    %v1873 = vsel %vm130, %v1670, 0
    %v1876 = vsel %vm130, %v1671, 0
    %v1879 = vsel %vm130, %v1672, 0
    %v1882 = vsel %vm130, %v1701, 0
    %v1885 = vsel %vm130, %v1702, 0
    %v1888 = vsel %vm130, %v1703, 0
    %v1891 = vsel %vm130, %v1704, 0
    %v1894 = vsel %vm130, %v1733, 0
    %v1897 = vsel %vm130, %v1734, 0
    %v1900 = vsel %vm130, %v1735, 0
    %v1903 = vsel %vm130, %v1736, 0
    %v1906 = vsel %vm130, %v1765, 0
    %v1909 = vsel %vm130, %v1766, 0
    %v1912 = vsel %vm130, %v1767, 0
    %v1915 = vsel %vm130, %v1768, 0
    %v1918 = vsel %vm130, %v1797, 0
    %v1921 = vsel %vm130, %v1798, 0
    %v1924 = vsel %vm130, %v1799, 0
    %v1927 = vsel %vm130, %v1800, 0
    %v1930 = vsel %vm130, %v1829, 0
    %v1933 = vsel %vm130, %v1830, 0
    %v1936 = vsel %vm130, %v1831, 0
    %v1939 = vsel %vm130, %v1832, 0
    %1941 = vmatprep.subr.mxu0 0.0
    %1942 = vmatpush1.msra.mxu0 %v1442
    %1943 = vmatprep.subr.mxu0 0.0
    %1944 = vmatpush1.msra.mxu0 %v1443
    %1945 = vmatprep.subr.mxu0 0.0
    %1946 = vmatpush1.msra.mxu0 0.0
    %1947 = vmatprep.subr.mxu0 0.0
    %1948 = vmatpush1.msra.mxu0 0.0
    %1949 = vmatprep.subr.mxu0 0.0
    %1950 = vmatpush1.msra.mxu0 0.0
    %1951 = vmatprep.subr.mxu0 0.0
    %1952 = vmatpush1.msra.mxu0 0.0
    %1953 = vmatprep.subr.mxu0 0.0
    %1954 = vmatpush1.msra.mxu0 0.0
    %1955 = vmatprep.subr.mxu0 0.0
    %1956 = vmatpush1.msra.mxu0 0.0
    %1957 = vmatprep.subr.mxu0 0.0
    %1958 = vmatpush1.msra.mxu0 0.0
    %1959 = vmatprep.subr.mxu0 0.0
    %1960 = vmatpush1.msra.mxu0 0.0
    %1961 = vmatprep.subr.mxu0 0.0
    %1962 = vmatpush1.msra.mxu0 0.0
    %1963 = vmatprep.subr.mxu0 0.0
    %1964 = vmatpush1.msra.mxu0 0.0
    %1965 = vmatprep.subr.mxu0 0.0
    %1966 = vmatpush1.msra.mxu0 0.0
    %1967 = vmatprep.subr.mxu0 0.0
    %1968 = vmatpush1.msra.mxu0 0.0
    %1969 = vmatprep.subr.mxu0 0.0
    %1970 = vmatpush1.msra.mxu0 0.0
    %1971 = vmatprep.subr.mxu0 0.0
    %1972 = vmatpush1.msra.mxu0 0.0
    %1973 = vmatprep.subr.mxu0 0.0
    %1974 = vmatpush1.msra.mxu0 0.0
    %1975 = vmatprep.subr.mxu0 0.0
    %1976 = vmatpush1.msra.mxu0 0.0
    %1977 = vmatprep.subr.mxu0 0.0
    %1978 = vmatpush1.msra.mxu0 0.0
    %1979 = vmatprep.subr.mxu0 0.0
    %1980 = vmatpush1.msra.mxu0 0.0
    %1981 = vmatprep.subr.mxu0 0.0
    %1982 = vmatpush1.msra.mxu0 0.0
    %1983 = vmatprep.subr.mxu0 0.0
    %1984 = vmatpush1.msra.mxu0 0.0
    %1985 = vmatprep.subr.mxu0 0.0
    %1986 = vmatpush1.msra.mxu0 0.0
    %1987 = vmatprep.subr.mxu0 0.0
    %1988 = vmatpush1.msra.mxu0 0.0
    %1989 = vmatprep.subr.mxu0 0.0
    %1990 = vmatpush1.msra.mxu0 0.0
    %1991 = vmatprep.subr.mxu0 0.0
    %1992 = vmatpush1.msra.mxu0 0.0
    %1993 = vmatprep.subr.mxu0 0.0
    %1994 = vmatpush1.msra.mxu0 0.0
    %1995 = vmatprep.subr.mxu0 0.0
    %1996 = vmatpush1.msra.mxu0 0.0
    %1997 = vmatprep.subr.mxu0 0.0
    %1998 = vmatpush1.msra.mxu0 0.0
    %1999 = vmatprep.subr.mxu0 0.0
    %2000 = vmatpush1.msra.mxu0 0.0
    %2001 = vmatprep.subr.mxu0 0.0
    %2002 = vmatpush1.msra.mxu0 0.0
    %2003 = vmatprep.subr.mxu0 0.0
    %2004 = vmatpush1.msra.mxu0 0.0
    %2005 = vmatprep.mubr.f32.mxu0 0.0
    %2006 = vmatmul.mubr.f32.gmra.mrb[0].mxu0 %v1846
    %v2007 = vpop.f32.mrb[0].mxu0
    %v2008 = vadd.f32 0.0, %v2007
    %v2009 = vpop.f32.mrb[0].mxu0
    %2010 = vmatprep.mubr.f32.mxu0 0.0
    %2011 = vmatmul.mubr.f32.gmra.mrb[0].mxu0 %v1849
    %v2012 = vpop.f32.mrb[0].mxu0
    %v2013 = vadd.f32 0.0, %v2012
    %v2014 = vpop.f32.mrb[0].mxu0
    %2015 = vmatprep.mubr.f32.mxu0 0.0
    %2016 = vmatmul.mubr.f32.gmra.mrb[0].mxu0 %v1852
    %v2017 = vpop.f32.mrb[0].mxu0
    %v2018 = vadd.f32 0.0, %v2017
    %v2019 = vpop.f32.mrb[0].mxu0
    %2020 = vmatprep.mubr.f32.mxu0 0.0
    %2021 = vmatmul.mubr.f32.gmra.mrb[0].mxu0 %v1855
    %v2022 = vpop.f32.mrb[0].mxu0
    %v2023 = vadd.f32 0.0, %v2022
    %v2024 = vpop.f32.mrb[0].mxu0
    %2025 = vmatprep.mubr.f32.mxu0 0.0
    %2026 = vmatmul.mubr.f32.gmra.mrb[0].mxu0 %v1858
    %v2027 = vpop.f32.mrb[0].mxu0
    %v2028 = vadd.f32 0.0, %v2027
    %v2029 = vpop.f32.mrb[0].mxu0
    %2030 = vmatprep.mubr.f32.mxu0 0.0
    %2031 = vmatmul.mubr.f32.gmra.mrb[0].mxu0 %v1861
    %v2032 = vpop.f32.mrb[0].mxu0
    %v2033 = vadd.f32 0.0, %v2032
    %v2034 = vpop.f32.mrb[0].mxu0
    %2035 = vmatprep.mubr.f32.mxu0 0.0
    %2036 = vmatmul.mubr.f32.gmra.mrb[0].mxu0 %v1864
    %v2037 = vpop.f32.mrb[0].mxu0
    %v2038 = vadd.f32 0.0, %v2037
    %v2039 = vpop.f32.mrb[0].mxu0
    %2040 = vmatprep.mubr.f32.mxu0 0.0
    %2041 = vmatmul.mubr.f32.gmra.mrb[0].mxu0 %v1867
    %v2042 = vpop.f32.mrb[0].mxu0
    %v2043 = vadd.f32 0.0, %v2042
    %v2044 = vpop.f32.mrb[0].mxu0
    %2045 = vmatprep.mubr.f32.mxu0 0.0
    %2046 = vmatmul.mubr.f32.gmra.mrb[0].mxu0 %v1870
    %v2047 = vpop.f32.mrb[0].mxu0
    %v2048 = vadd.f32 0.0, %v2047
    %v2049 = vpop.f32.mrb[0].mxu0
    %2050 = vmatprep.mubr.f32.mxu0 0.0
    %2051 = vmatmul.mubr.f32.gmra.mrb[0].mxu0 %v1873
    %v2052 = vpop.f32.mrb[0].mxu0
    %v2053 = vadd.f32 0.0, %v2052
    %v2054 = vpop.f32.mrb[0].mxu0
    %2055 = vmatprep.mubr.f32.mxu0 0.0
    %2056 = vmatmul.mubr.f32.gmra.mrb[0].mxu0 %v1876
    %v2057 = vpop.f32.mrb[0].mxu0
    %v2058 = vadd.f32 0.0, %v2057
    %v2059 = vpop.f32.mrb[0].mxu0
    %2060 = vmatprep.mubr.f32.mxu0 0.0
    %2061 = vmatmul.mubr.f32.gmra.mrb[0].mxu0 %v1879
    %v2062 = vpop.f32.mrb[0].mxu0
    %v2063 = vadd.f32 0.0, %v2062
    %v2064 = vpop.f32.mrb[0].mxu0
    %2065 = vmatprep.mubr.f32.mxu0 0.0
    %2066 = vmatmul.mubr.f32.gmra.mrb[0].mxu0 %v1882
    %v2067 = vpop.f32.mrb[0].mxu0
    %v2068 = vadd.f32 0.0, %v2067
    %v2069 = vpop.f32.mrb[0].mxu0
    %2070 = vmatprep.mubr.f32.mxu0 0.0
    %2071 = vmatmul.mubr.f32.gmra.mrb[0].mxu0 %v1885
    %v2072 = vpop.f32.mrb[0].mxu0
    %v2073 = vadd.f32 0.0, %v2072
    %v2074 = vpop.f32.mrb[0].mxu0
    %2075 = vmatprep.mubr.f32.mxu0 0.0
    %2076 = vmatmul.mubr.f32.gmra.mrb[0].mxu0 %v1888
    %v2077 = vpop.f32.mrb[0].mxu0
    %v2078 = vadd.f32 0.0, %v2077
    %v2079 = vpop.f32.mrb[0].mxu0
    %2080 = vmatprep.mubr.f32.mxu0 0.0
    %2081 = vmatmul.mubr.f32.gmra.mrb[0].mxu0 %v1891
    %v2082 = vpop.f32.mrb[0].mxu0
    %v2083 = vadd.f32 0.0, %v2082
    %v2084 = vpop.f32.mrb[0].mxu0
    %2085 = vmatprep.mubr.f32.mxu0 0.0
    %2086 = vmatmul.mubr.f32.gmra.mrb[0].mxu0 %v1894
    %v2087 = vpop.f32.mrb[0].mxu0
    %v2088 = vadd.f32 0.0, %v2087
    %v2089 = vpop.f32.mrb[0].mxu0
    %2090 = vmatprep.mubr.f32.mxu0 0.0
    %2091 = vmatmul.mubr.f32.gmra.mrb[0].mxu0 %v1897
    %v2092 = vpop.f32.mrb[0].mxu0
    %v2093 = vadd.f32 0.0, %v2092
    %v2094 = vpop.f32.mrb[0].mxu0
    %2095 = vmatprep.mubr.f32.mxu0 0.0
    %2096 = vmatmul.mubr.f32.gmra.mrb[0].mxu0 %v1900
    %v2097 = vpop.f32.mrb[0].mxu0
    %v2098 = vadd.f32 0.0, %v2097
    %v2099 = vpop.f32.mrb[0].mxu0
    %2100 = vmatprep.mubr.f32.mxu0 0.0
    %2101 = vmatmul.mubr.f32.gmra.mrb[0].mxu0 %v1903
    %v2102 = vpop.f32.mrb[0].mxu0
    %v2103 = vadd.f32 0.0, %v2102
    %v2104 = vpop.f32.mrb[0].mxu0
    %2105 = vmatprep.mubr.f32.mxu0 0.0
    %2106 = vmatmul.mubr.f32.gmra.mrb[0].mxu0 %v1906
    %v2107 = vpop.f32.mrb[0].mxu0
    %v2108 = vadd.f32 0.0, %v2107
    %v2109 = vpop.f32.mrb[0].mxu0
    %2110 = vmatprep.mubr.f32.mxu0 0.0
    %2111 = vmatmul.mubr.f32.gmra.mrb[0].mxu0 %v1909
    %v2112 = vpop.f32.mrb[0].mxu0
    %v2113 = vadd.f32 0.0, %v2112
    %v2114 = vpop.f32.mrb[0].mxu0
    %2115 = vmatprep.mubr.f32.mxu0 0.0
    %2116 = vmatmul.mubr.f32.gmra.mrb[0].mxu0 %v1912
    %v2117 = vpop.f32.mrb[0].mxu0
    %v2118 = vadd.f32 0.0, %v2117
    %v2119 = vpop.f32.mrb[0].mxu0
    %2120 = vmatprep.mubr.f32.mxu0 0.0
    %2121 = vmatmul.mubr.f32.gmra.mrb[0].mxu0 %v1915
    %v2122 = vpop.f32.mrb[0].mxu0
    %v2123 = vadd.f32 0.0, %v2122
    %v2124 = vpop.f32.mrb[0].mxu0
    %2125 = vmatprep.mubr.f32.mxu0 0.0
    %2126 = vmatmul.mubr.f32.gmra.mrb[0].mxu0 %v1918
    %v2127 = vpop.f32.mrb[0].mxu0
    %v2128 = vadd.f32 0.0, %v2127
    %v2129 = vpop.f32.mrb[0].mxu0
    %2130 = vmatprep.mubr.f32.mxu0 0.0
    %2131 = vmatmul.mubr.f32.gmra.mrb[0].mxu0 %v1921
    %v2132 = vpop.f32.mrb[0].mxu0
    %v2133 = vadd.f32 0.0, %v2132
    %v2134 = vpop.f32.mrb[0].mxu0
    %2135 = vmatprep.mubr.f32.mxu0 0.0
    %2136 = vmatmul.mubr.f32.gmra.mrb[0].mxu0 %v1924
    %v2137 = vpop.f32.mrb[0].mxu0
    %v2138 = vadd.f32 0.0, %v2137
    %v2139 = vpop.f32.mrb[0].mxu0
    %2140 = vmatprep.mubr.f32.mxu0 0.0
    %2141 = vmatmul.mubr.f32.gmra.mrb[0].mxu0 %v1927
    %v2142 = vpop.f32.mrb[0].mxu0
    %v2143 = vadd.f32 0.0, %v2142
    %v2144 = vpop.f32.mrb[0].mxu0
    %2145 = vmatprep.mubr.f32.mxu0 0.0
    %2146 = vmatmul.mubr.f32.gmra.mrb[0].mxu0 %v1930
    %v2147 = vpop.f32.mrb[0].mxu0
    %v2148 = vadd.f32 0.0, %v2147
    %v2149 = vpop.f32.mrb[0].mxu0
    %2150 = vmatprep.mubr.f32.mxu0 0.0
    %2151 = vmatmul.mubr.f32.gmra.mrb[0].mxu0 %v1933
    %v2152 = vpop.f32.mrb[0].mxu0
    %v2153 = vadd.f32 0.0, %v2152
    %v2154 = vpop.f32.mrb[0].mxu0
    %2155 = vmatprep.mubr.f32.mxu0 0.0
    %2156 = vmatmul.mubr.f32.gmra.mrb[0].mxu0 %v1936
    %v2157 = vpop.f32.mrb[0].mxu0
    %v2158 = vadd.f32 0.0, %v2157
    %v2159 = vpop.f32.mrb[0].mxu0
    %2160 = vmatprep.mubr.f32.mxu0 0.0
    %2161 = vmatmul.mubr.f32.gmra.mrb[0].mxu0 %v1939
    %v2162 = vpop.f32.mrb[0].mxu0
    %v2163 = vadd.f32 0.0, %v2162
    %v2164 = vpop.f32.mrb[0].mxu0
    %2165 = vdwg.mxu0
    %v2166 = vand.u32 2147483647, %v2008
    %v2167 = vand.u32 2147483647, %v2013
    %v2168 = vand.u32 2147483647, %v2018
    %v2169 = vand.u32 2147483647, %v2023
    %v2170 = vand.u32 2147483647, %v2028
    %v2171 = vand.u32 2147483647, %v2033
    %v2172 = vand.u32 2147483647, %v2038
    %v2173 = vand.u32 2147483647, %v2043
    %v2174 = vand.u32 2147483647, %v2048
    %v2175 = vand.u32 2147483647, %v2053
    %v2176 = vand.u32 2147483647, %v2058
    %v2177 = vand.u32 2147483647, %v2063
    %v2178 = vand.u32 2147483647, %v2068
    %v2179 = vand.u32 2147483647, %v2073
    %v2180 = vand.u32 2147483647, %v2078
    %v2181 = vand.u32 2147483647, %v2083
    %v2182 = vand.u32 2147483647, %v2088
    %v2183 = vand.u32 2147483647, %v2093
    %v2184 = vand.u32 2147483647, %v2098
    %v2185 = vand.u32 2147483647, %v2103
    %v2186 = vand.u32 2147483647, %v2108
    %v2187 = vand.u32 2147483647, %v2113
    %v2188 = vand.u32 2147483647, %v2118
    %v2189 = vand.u32 2147483647, %v2123
    %v2190 = vand.u32 2147483647, %v2128
    %v2191 = vand.u32 2147483647, %v2133
    %v2192 = vand.u32 2147483647, %v2138
    %v2193 = vand.u32 2147483647, %v2143
    %v2194 = vand.u32 2147483647, %v2148
    %v2195 = vand.u32 2147483647, %v2153
    %v2196 = vand.u32 2147483647, %v2158
    %v2197 = vand.u32 2147483647, %v2163
    %vm2198 = vcmask 261120
    %v2199 = vsel %vm2198, %v2166, 0.0
    %2200 = vadd.xlane.f32.xlu0 %v2199
    %v2201 = vpop.xlane.xlu0 %2200
    %v2202 = vsel %vm2198, %v2167, 0.0
    %2203 = vadd.xlane.f32.xlu0 %v2202
    %v2204 = vpop.xlane.xlu0 %2203
    %v2205 = vsel %vm2198, %v2168, 0.0
    %2206 = vadd.xlane.f32.xlu0 %v2205
    %v2207 = vpop.xlane.xlu0 %2206
    %v2208 = vsel %vm2198, %v2169, 0.0
    %2209 = vadd.xlane.f32.xlu0 %v2208
    %v2210 = vpop.xlane.xlu0 %2209
    %v2211 = vsel %vm2198, %v2170, 0.0
    %2212 = vadd.xlane.f32.xlu0 %v2211
    %v2213 = vpop.xlane.xlu0 %2212
    %v2214 = vsel %vm2198, %v2171, 0.0
    %2215 = vadd.xlane.f32.xlu0 %v2214
    %v2216 = vpop.xlane.xlu0 %2215
    %v2217 = vsel %vm2198, %v2172, 0.0
    %2218 = vadd.xlane.f32.xlu0 %v2217
    %v2219 = vpop.xlane.xlu0 %2218
    %v2220 = vsel %vm2198, %v2173, 0.0
    %2221 = vadd.xlane.f32.xlu0 %v2220
    %v2222 = vpop.xlane.xlu0 %2221
    %v2223 = vsel %vm2198, %v2174, 0.0
    %2224 = vadd.xlane.f32.xlu0 %v2223
    %v2225 = vpop.xlane.xlu0 %2224
    %v2226 = vsel %vm2198, %v2175, 0.0
    %2227 = vadd.xlane.f32.xlu0 %v2226
    %v2228 = vpop.xlane.xlu0 %2227
    %v2229 = vsel %vm2198, %v2176, 0.0
    %2230 = vadd.xlane.f32.xlu0 %v2229
    %v2231 = vpop.xlane.xlu0 %2230
    %v2232 = vsel %vm2198, %v2177, 0.0
    %2233 = vadd.xlane.f32.xlu0 %v2232
    %v2234 = vpop.xlane.xlu0 %2233
    %v2235 = vsel %vm2198, %v2178, 0.0
    %2236 = vadd.xlane.f32.xlu0 %v2235
    %v2237 = vpop.xlane.xlu0 %2236
    %v2238 = vsel %vm2198, %v2179, 0.0
    %2239 = vadd.xlane.f32.xlu0 %v2238
    %v2240 = vpop.xlane.xlu0 %2239
    %v2241 = vsel %vm2198, %v2180, 0.0
    %2242 = vadd.xlane.f32.xlu0 %v2241
    %v2243 = vpop.xlane.xlu0 %2242
    %v2244 = vsel %vm2198, %v2181, 0.0
    %2245 = vadd.xlane.f32.xlu0 %v2244
    %v2246 = vpop.xlane.xlu0 %2245
    %v2247 = vsel %vm2198, %v2182, 0.0
    %2248 = vadd.xlane.f32.xlu0 %v2247
    %v2249 = vpop.xlane.xlu0 %2248
    %v2250 = vsel %vm2198, %v2183, 0.0
    %2251 = vadd.xlane.f32.xlu0 %v2250
    %v2252 = vpop.xlane.xlu0 %2251
    %v2253 = vsel %vm2198, %v2184, 0.0
    %2254 = vadd.xlane.f32.xlu0 %v2253
    %v2255 = vpop.xlane.xlu0 %2254
    %v2256 = vsel %vm2198, %v2185, 0.0
    %2257 = vadd.xlane.f32.xlu0 %v2256
    %v2258 = vpop.xlane.xlu0 %2257
    %v2259 = vsel %vm2198, %v2186, 0.0
    %2260 = vadd.xlane.f32.xlu0 %v2259
    %v2261 = vpop.xlane.xlu0 %2260
    %v2262 = vsel %vm2198, %v2187, 0.0
    %2263 = vadd.xlane.f32.xlu0 %v2262
    %v2264 = vpop.xlane.xlu0 %2263
    %v2265 = vsel %vm2198, %v2188, 0.0
    %2266 = vadd.xlane.f32.xlu0 %v2265
    %v2267 = vpop.xlane.xlu0 %2266
    %v2268 = vsel %vm2198, %v2189, 0.0
    %2269 = vadd.xlane.f32.xlu0 %v2268
    %v2270 = vpop.xlane.xlu0 %2269
    %v2271 = vsel %vm2198, %v2190, 0.0
    %2272 = vadd.xlane.f32.xlu0 %v2271
    %v2273 = vpop.xlane.xlu0 %2272
    %v2274 = vsel %vm2198, %v2191, 0.0
    %2275 = vadd.xlane.f32.xlu0 %v2274
    %v2276 = vpop.xlane.xlu0 %2275
    %v2277 = vsel %vm2198, %v2192, 0.0
    %2278 = vadd.xlane.f32.xlu0 %v2277
    %v2279 = vpop.xlane.xlu0 %2278
    %v2280 = vsel %vm2198, %v2193, 0.0
    %2281 = vadd.xlane.f32.xlu0 %v2280
    %v2282 = vpop.xlane.xlu0 %2281
    %v2283 = vsel %vm2198, %v2194, 0.0
    %2284 = vadd.xlane.f32.xlu0 %v2283
    %v2285 = vpop.xlane.xlu0 %2284
    %v2286 = vsel %vm2198, %v2195, 0.0
    %2287 = vadd.xlane.f32.xlu0 %v2286
    %v2288 = vpop.xlane.xlu0 %2287
    %v2289 = vsel %vm2198, %v2196, 0.0
    %2290 = vadd.xlane.f32.xlu0 %v2289
    %v2291 = vpop.xlane.xlu0 %2290
    %v2292 = vsel %vm2198, %v2197, 0.0
    %2293 = vadd.xlane.f32.xlu0 %v2292
    %v2294 = vpop.xlane.xlu0 %2293
    %v2295 = vadd.f32 %v2201, %v2204
    %v2296 = vadd.f32 %v2295, %v2207
    %v2297 = vadd.f32 %v2296, %v2210
    %v2298 = vadd.f32 %v2297, %v2213
    %v2299 = vadd.f32 %v2298, %v2216
    %v2300 = vadd.f32 %v2299, %v2219
    %v2301 = vadd.f32 %v2300, %v2222
    %v2302 = vadd.f32 %v2301, %v2225
    %v2303 = vadd.f32 %v2302, %v2228
    %v2304 = vadd.f32 %v2303, %v2231
    %v2305 = vadd.f32 %v2304, %v2234
    %v2306 = vadd.f32 %v2305, %v2237
    %v2307 = vadd.f32 %v2306, %v2240
    %v2308 = vadd.f32 %v2307, %v2243
    %v2309 = vadd.f32 %v2308, %v2246
    %v2310 = vadd.f32 %v2309, %v2249
    %v2311 = vadd.f32 %v2310, %v2252
    %v2312 = vadd.f32 %v2311, %v2255
    %v2313 = vadd.f32 %v2312, %v2258
    %v2314 = vadd.f32 %v2313, %v2261
    %v2315 = vadd.f32 %v2314, %v2264
    %v2316 = vadd.f32 %v2315, %v2267
    %v2317 = vadd.f32 %v2316, %v2270
    %v2318 = vadd.f32 %v2317, %v2273
    %v2319 = vadd.f32 %v2318, %v2276
    %v2320 = vadd.f32 %v2319, %v2279
    %v2321 = vadd.f32 %v2320, %v2282
    %v2322 = vadd.f32 %v2321, %v2285
    %v2323 = vadd.f32 %v2322, %v2288
    %v2324 = vadd.f32 %v2323, %v2291
    %v2325 = vadd.f32 %v2324, %v2294
    %v2326 = vrot.slane %v2325, 4
    %v2327 = vadd.f32 %v2325, %v2326
    %v2328 = vrot.slane %v2327, 2
    %v2329 = vadd.f32 %v2327, %v2328
    %v2330 = vrot.slane %v2329, 1
    %v2331 = vadd.f32 %v2329, %v2330
    %v2332 = vadd.f32 %v1439, %v2331
    %v2333 = vld [vmem:[#allocation7] sm:$0x1]
    %v2334 = vadd.f32 %v2333, %v2332
    %vm2335 = vcmask 0
    %2336 = vst.msk [vmem:[#allocation7] sm:$0x1] %vm2335, %v2334
    // Predicated region
    $region46: #{tpu_custom_call.1} parent=1 // pred_check
      _
    $region47: #{tpu_custom_call.1} parent=1 // pred_check_branch
      %2338 = sbr.rel (0) target = $region49
    $region48: #{tpu_custom_call.1} parent=1 // pred_region
      %s2340 = ssub.s32 16, 16
      %2341 = vsyncadd [#allocation4], %s2340
      %s2343 = sshll.u32 [#allocation7], 4
      %s2344 = int_to_ptr.vmem [resolvable:$true] %s2343
      %2346 = dma.vmem_to_hbm [thread:$0]  %s2344, 16, %s8, [#allocation4]
    $region49: #{tpu_custom_call.1} parent=1 // pred_fallthru
      _
    // Predicated region
    $region50: #{tpu_custom_call.1} parent=1 // pred_check
      _
    $region51: #{tpu_custom_call.1} parent=1 // pred_check_branch
      %2348 = sbr.rel (0) target = $region53
    $region52: #{tpu_custom_call.1} parent=1 // pred_region
      %2349 = dma.done [#allocation4], 16
    $region53: #{tpu_custom_call.1} parent=1 // pred_fallthru
      _
    %2350 = vsyncpa [#allocation3], 1
    %2351 = vsyncpa [#allocation6], 1
    %2352 = vsyncpa [#allocation4], 1

</llo_original>
